<compile_context>
chip_gen: v7x
topology: tpu7x:2x2x1
jax: 0.10.0
libtpu: 0.0.40
codegen_flags: <defaults>
</compile_context>

<pallas_src>
import jax
import jax.numpy as jnp
import numpy as np
from jax.experimental import pallas as pl
from jax.experimental.pallas import tpu as pltpu

EPS = 1e-5  # PyTorch BatchNorm2d default eps


# ------------------------------ fused kernel --------------------------------

def _convnet_kernel(x_ref, w1_ref, b1_ref, w3_ref, b3_ref, wfc_ref, bfc_ref,
                    out_ref, p3_ref):
    HP = p3_ref.shape[0] - 2              # pooled height (16)

    xe = x_ref[0, 0]                      # (HP+1, (W+2)*CIN) even padded input rows
    xo = x_ref[0, 1]                      # (HP+1, (W+2)*CIN) odd  padded input rows
    ae, be = xe[0:HP, :], xe[1:HP + 1, :]
    ao, bo = xo[0:HP, :], xo[1:HP + 1, :]

    def mm(a, b):
        return jnp.dot(a, b, preferred_element_type=jnp.float32)

    # ---- conv1 (+ folded BN scale) evaluated at the four 2x2-pool taps ------
    # Toeplitz-in-W weights: w1_ref[parity_w, ky] is (102, 192), output lanes
    # are the pooled (wp, c1) layout.  12 lane-dense MXU dots total.
    acc_ee = mm(ae, w1_ref[0, 0]) + mm(ao, w1_ref[0, 1]) + mm(be, w1_ref[0, 2])
    acc_eo = mm(ae, w1_ref[1, 0]) + mm(ao, w1_ref[1, 1]) + mm(be, w1_ref[1, 2])
    acc_oe = mm(ao, w1_ref[0, 0]) + mm(be, w1_ref[0, 1]) + mm(bo, w1_ref[0, 2])
    acc_oo = mm(ao, w1_ref[1, 0]) + mm(be, w1_ref[1, 1]) + mm(bo, w1_ref[1, 2])

    # maxpool(relu(bn(conv))) == relu(max(scaled convs) + bias): scale is folded
    # into the weights, bias is shared by the 4 taps, relu is monotone.
    pooled = jnp.maximum(jnp.maximum(acc_ee, acc_eo), jnp.maximum(acc_oe, acc_oo))
    y2 = jnp.maximum(pooled + b1_ref[...], 0.0)          # (16, 16*12) = (hp, (wp, c1))

    # ---- zero only the two H border rows; W-padding is inside the w3 weight --
    zrow = jnp.zeros((1, p3_ref.shape[1]), jnp.float32)
    p3_ref[0:1, :] = zrow
    p3_ref[HP + 1:HP + 2, :] = zrow
    p3_ref[1:HP + 1, :] = y2

    # ---- conv3 (+ folded BN scale) + bias + ReLU: 3 lane-dense Toeplitz dots --
    acc3 = mm(p3_ref[0:HP, :], w3_ref[0])
    acc3 = acc3 + mm(p3_ref[1:HP + 1, :], w3_ref[1])
    acc3 = acc3 + mm(p3_ref[2:HP + 2, :], w3_ref[2])
    y3 = jnp.maximum(acc3 + b3_ref[...], 0.0)            # (16, 16*32) = (hp, (wp, c3))

    # ---- fc: contract against per-class weight slabs (host pre-permuted to
    # y3's layout); no iota/select chains, no lane-sparse (8192, 2) weight.
    p0 = jnp.sum(y3 * wfc_ref[0], axis=1, keepdims=True)  # (16, 1)
    p1 = jnp.sum(y3 * wfc_ref[1], axis=1, keepdims=True)  # (16, 1)
    partial = jnp.concatenate([p0, p1], axis=1)           # (16, 2)
    logits = jnp.sum(partial, axis=0, keepdims=True) + bfc_ref[...]   # (1, 2)
    out_ref[...] = logits.reshape(1, 1, -1)


# ------------------------------ host wrapper ---------------------------------

def convnet_forward(x_nchw, prepped):
    n, cin, h, w = x_nchw.shape
    assert h % 2 == 0 and w % 2 == 0, "2x2/2 max-pool needs even spatial dims"
    hp, wp = h // 2, w // 2
    c1 = prepped["b1"].shape[1] // wp
    nc = prepped["bfc"].shape[1]

    # Pack the input into ONE lane-dense slab: NCHW -> NHWC -> zero-pad ->
    # fuse (w, cin) onto the lane dim -> split padded rows by parity.
    xt = jnp.transpose(x_nchw, (0, 2, 3, 1))
    xpad = jnp.pad(xt, ((0, 0), (1, 1), (1, 1), (0, 0)))
    xrow = xpad.reshape(n, h + 2, (w + 2) * cin)
    xpk = jnp.stack([xrow[:, 0::2, :], xrow[:, 1::2, :]], axis=1)  # (n,2,hp+1,(w+2)*cin)

    out = pl.pallas_call(
        _convnet_kernel,
        out_shape=jax.ShapeDtypeStruct((n, 1, nc), jnp.float32),
        grid_spec=pltpu.PrefetchScalarGridSpec(
            num_scalar_prefetch=0,
            grid=(n,),
            in_specs=[
                pl.BlockSpec((1, 2, hp + 1, (w + 2) * cin), lambda i: (i, 0, 0, 0)),
                pl.BlockSpec(prepped["w1t"].shape, lambda i: (0, 0, 0, 0)),
                pl.BlockSpec(prepped["b1"].shape, lambda i: (0, 0)),
                pl.BlockSpec(prepped["w3t"].shape, lambda i: (0, 0, 0)),
                pl.BlockSpec(prepped["b3"].shape, lambda i: (0, 0)),
                pl.BlockSpec(prepped["wfc"].shape, lambda i: (0, 0, 0)),
                pl.BlockSpec(prepped["bfc"].shape, lambda i: (0, 0)),
            ],
            out_specs=pl.BlockSpec((1, 1, nc), lambda i: (i, 0, 0)),
            scratch_shapes=[pltpu.VMEM((hp + 2, wp * c1), jnp.float32)],
        ),
        compiler_params=pltpu.CompilerParams(
            dimension_semantics=("parallel",),      # v7x: one image per TensorCore
            vmem_limit_bytes=32 * 1024 * 1024,      # headroom vs v5e 16 MiB default
        ),
    )(xpk, prepped["w1t"], prepped["b1"], prepped["w3t"], prepped["b3"],
      prepped["wfc"], prepped["bfc"])
    return out.reshape(n, nc)


def prepare_params(params, h=32, w=32):
    """Fold inference BN into conv weights/bias and build lane-dense
    Toeplitz-in-W weights / pre-permuted FC slabs (one-time host prep)."""
    hp, wp = h // 2, w // 2
    cin, c1, c3 = params["W1"].shape[1], params["W1"].shape[0], params["W3"].shape[0]
    nc = params["Wfc"].shape[0]

    s1 = np.asarray(params["g1"] / jnp.sqrt(params["v1"] + EPS))
    bias1 = np.asarray(params["b1"] - params["m1"]) * s1 + np.asarray(params["be1"])
    W1s = np.asarray(params["W1"]) * s1[:, None, None, None]        # (c1, cin, ky, kx)

    # conv1 Toeplitz weights: [parity_w, ky, (padded_col, cin), (wp, c1)]
    w1t = np.zeros((2, 3, (w + 2) * cin, wp * c1), np.float32)
    for par in range(2):                       # output column = 2*wp + par
        for ky in range(3):
            for kx in range(3):
                for j in range(wp):
                    win = 2 * j + par + kx     # padded input column
                    w1t[par, ky, win * cin:(win + 1) * cin,
                        j * c1:(j + 1) * c1] = W1s[:, :, ky, kx].T

    s3 = np.asarray(params["g3"] / jnp.sqrt(params["v3"] + EPS))
    bias3 = np.asarray(params["b3"] - params["m3"]) * s3 + np.asarray(params["be3"])
    W3s = np.asarray(params["W3"]) * s3[:, None, None, None]        # (c3, c1, ky, kx)

    # conv3 Toeplitz weights: [ky, (wq, c1), (wp, c3)]; W zero-padding is
    # implicit (out-of-range wq simply has no row).
    w3t = np.zeros((3, wp * c1, wp * c3), np.float32)
    for ky in range(3):
        for kx in range(3):
            for j in range(wp):
                wq = j + kx - 1
                if 0 <= wq < wp:
                    w3t[ky, wq * c1:(wq + 1) * c1,
                        j * c3:(j + 1) * c3] = W3s[:, :, ky, kx].T

    # fc weight: PyTorch NCHW flatten (c*hp*wp) -> per-class (hp, (wp, c3)) slab
    wfc = np.asarray(params["Wfc"]).reshape(nc, c3, hp, wp)
    wfc = np.transpose(wfc, (0, 2, 3, 1)).reshape(nc, hp, wp * c3)

    return {
        "w1t": jnp.asarray(w1t),
        "b1": jnp.asarray(np.tile(bias1, wp).reshape(1, wp * c1)),
        "w3t": jnp.asarray(w3t),
        "b3": jnp.asarray(np.tile(bias3, wp).reshape(1, wp * c3)),
        "wfc": jnp.asarray(wfc),
        "bfc": jnp.asarray(params["bfc"]).reshape(1, nc),
    }


# ---------------------------- pure-JAX reference -----------------------------

def reference_forward(x_nchw, params):
    def conv(x, w, b):
        y = jax.lax.conv_general_dilated(
            x, w, window_strides=(1, 1), padding=((1, 1), (1, 1)),
            dimension_numbers=("NCHW", "OIHW", "NCHW"))
        return y + b[None, :, None, None]

    def bn(x, g, be, m, v):
        return (x - m[None, :, None, None]) * (
            g[None, :, None, None] / jnp.sqrt(v[None, :, None, None] + EPS)
        ) + be[None, :, None, None]

    y = jax.nn.relu(bn(conv(x_nchw, params["W1"], params["b1"]),
                       params["g1"], params["be1"], params["m1"], params["v1"]))
    y = jax.lax.reduce_window(y, -jnp.inf, jax.lax.max,
                              (1, 1, 2, 2), (1, 1, 2, 2), "VALID")
    y = jax.nn.relu(bn(conv(y, params["W3"], params["b3"]),
                       params["g3"], params["be3"], params["m3"], params["v3"]))
    y = y.reshape(y.shape[0], -1)
    return y @ params["Wfc"].T + params["bfc"]


# ------------------------------ params & main ---------------------------------

def init_params(key):
    ks = jax.random.split(key, 16)
    p = {}
    p["W1"] = 0.1 * jax.random.normal(ks[0], (12, 3, 3, 3), jnp.float32)
    p["b1"] = 0.05 * jax.random.normal(ks[1], (12,), jnp.float32)
    p["g1"] = 1.0 + 0.1 * jax.random.normal(ks[2], (12,), jnp.float32)
    p["be1"] = 0.05 * jax.random.normal(ks[3], (12,), jnp.float32)
    p["m1"] = 0.05 * jax.random.normal(ks[4], (12,), jnp.float32)
    p["v1"] = jax.random.uniform(ks[5], (12,), jnp.float32, 0.5, 1.5)
    p["W3"] = 0.1 * jax.random.normal(ks[6], (32, 12, 3, 3), jnp.float32)
    p["b3"] = 0.05 * jax.random.normal(ks[7], (32,), jnp.float32)
    p["g3"] = 1.0 + 0.1 * jax.random.normal(ks[8], (32,), jnp.float32)
    p["be3"] = 0.05 * jax.random.normal(ks[9], (32,), jnp.float32)
    p["m3"] = 0.05 * jax.random.normal(ks[10], (32,), jnp.float32)
    p["v3"] = jax.random.uniform(ks[11], (32,), jnp.float32, 0.5, 1.5)
    p["Wfc"] = 0.02 * jax.random.normal(ks[12], (2, 32 * 16 * 16), jnp.float32)
    p["bfc"] = 0.05 * jax.random.normal(ks[13], (2,), jnp.float32)
    return p


if __name__ == "__main__":
    key = jax.random.PRNGKey(0)
    kx, kp = jax.random.split(key)
    params = init_params(kp)
    prepped = prepare_params(params)   # one-time host-side weight prep (BN fold)

    # fc expects 32*16*16 features -> input spatial must be 32x32 (pool halves it)
    x = jax.random.normal(kx, (2, 3, 32, 32), jnp.float32)  # NCHW, like PyTorch

    out = jax.jit(convnet_forward)(x, prepped)
    out = jax.block_until_ready(out)

    ref = reference_forward(x, params)
    assert out.shape == (2, 2), out.shape
    # BN folding + MXU f32 accumulation vs unfused XLA reference: ~1e-3 agreement.
    assert jnp.allclose(out, ref, rtol=2e-3, atol=2e-3), (out, ref)
    print("KERNEL_OK")
</pallas_src>

<mosaic_0001>
module attributes {stable_mosaic.version = 11 : i64} {
  func.func @_convnet_kernel(%arg0: i32, %arg1: memref<1x2x17x102xf32, #tpu.memory_space<vmem>>, %arg2: memref<2x3x102x192xf32, #tpu.memory_space<vmem>>, %arg3: memref<1x192xf32, #tpu.memory_space<vmem>>, %arg4: memref<3x192x512xf32, #tpu.memory_space<vmem>>, %arg5: memref<1x512xf32, #tpu.memory_space<vmem>>, %arg6: memref<2x16x512xf32, #tpu.memory_space<vmem>>, %arg7: memref<1x2xf32, #tpu.memory_space<vmem>>, %arg8: memref<1x1x2xf32, #tpu.memory_space<vmem>>, %arg9: memref<18x192xf32, #tpu.memory_space<vmem>>) attributes {dimension_semantics = [#tpu.dimension_semantics<parallel>], iteration_bounds = array<i64: 2>, scalar_prefetch = 0 : i64, scratch_operands = 1 : i64, tpu.core_type = #tpu.core_type<tc>, window_params = [{transform_indices = @transform_0, window_bounds = array<i64: 1, 2, 17, 102>}, {pipeline_mode = #tpu.pipeline_mode<synchronous>, transform_indices = @transform_1, window_bounds = array<i64: 2, 3, 102, 192>}, {pipeline_mode = #tpu.pipeline_mode<synchronous>, transform_indices = @transform_2, window_bounds = array<i64: 1, 192>}, {pipeline_mode = #tpu.pipeline_mode<synchronous>, transform_indices = @transform_3, window_bounds = array<i64: 3, 192, 512>}, {pipeline_mode = #tpu.pipeline_mode<synchronous>, transform_indices = @transform_4, window_bounds = array<i64: 1, 512>}, {pipeline_mode = #tpu.pipeline_mode<synchronous>, transform_indices = @transform_5, window_bounds = array<i64: 2, 16, 512>}, {pipeline_mode = #tpu.pipeline_mode<synchronous>, transform_indices = @transform_6, window_bounds = array<i64: 1, 2>}, {transform_indices = @transform_7, window_bounds = array<i64: 1, 1, 2>}]} {
    %c0 = arith.constant 0 : index
    %c0_0 = arith.constant 0 : index
    %c0_1 = arith.constant 0 : index
    %c0_2 = arith.constant 0 : index
    %0 = vector.load %arg1[%c0, %c0_0, %c0_1, %c0_2] : memref<1x2x17x102xf32, #tpu.memory_space<vmem>>, vector<1x1x17x102xf32>
    %1 = vector.shape_cast %0 : vector<1x1x17x102xf32> to vector<17x102xf32>
    %c0_3 = arith.constant 0 : index
    %c1 = arith.constant 1 : index
    %c0_4 = arith.constant 0 : index
    %c0_5 = arith.constant 0 : index
    %2 = vector.load %arg1[%c0_3, %c1, %c0_4, %c0_5] : memref<1x2x17x102xf32, #tpu.memory_space<vmem>>, vector<1x1x17x102xf32>
    %3 = vector.shape_cast %2 : vector<1x1x17x102xf32> to vector<17x102xf32>
    %4 = vector.extract_strided_slice %1 {offsets = [0, 0], sizes = [16, 102], strides = [1, 1]} : vector<17x102xf32> to vector<16x102xf32>
    %5 = vector.extract_strided_slice %1 {offsets = [1, 0], sizes = [16, 102], strides = [1, 1]} : vector<17x102xf32> to vector<16x102xf32>
    %6 = vector.extract_strided_slice %3 {offsets = [0, 0], sizes = [16, 102], strides = [1, 1]} : vector<17x102xf32> to vector<16x102xf32>
    %7 = vector.extract_strided_slice %3 {offsets = [1, 0], sizes = [16, 102], strides = [1, 1]} : vector<17x102xf32> to vector<16x102xf32>
    %c0_6 = arith.constant 0 : index
    %c0_7 = arith.constant 0 : index
    %c0_8 = arith.constant 0 : index
    %c0_9 = arith.constant 0 : index
    %8 = vector.load %arg2[%c0_6, %c0_7, %c0_8, %c0_9] : memref<2x3x102x192xf32, #tpu.memory_space<vmem>>, vector<1x1x102x192xf32>
    %9 = vector.shape_cast %8 : vector<1x1x102x192xf32> to vector<102x192xf32>
    %cst = arith.constant dense<0.000000e+00> : vector<16x192xf32>
    %10 = tpu.matmul %4, %9, %cst {dimension_numbers = #tpu.dot_dimension_numbers<[1], [0], [0], [1], [0, 0, 1, 1], [], []>} : vector<16x102xf32>, vector<102x192xf32>, vector<16x192xf32> -> vector<16x192xf32>
    %c0_10 = arith.constant 0 : index
    %c1_11 = arith.constant 1 : index
    %c0_12 = arith.constant 0 : index
    %c0_13 = arith.constant 0 : index
    %11 = vector.load %arg2[%c0_10, %c1_11, %c0_12, %c0_13] : memref<2x3x102x192xf32, #tpu.memory_space<vmem>>, vector<1x1x102x192xf32>
    %12 = vector.shape_cast %11 : vector<1x1x102x192xf32> to vector<102x192xf32>
    %cst_14 = arith.constant dense<0.000000e+00> : vector<16x192xf32>
    %13 = tpu.matmul %6, %12, %cst_14 {dimension_numbers = #tpu.dot_dimension_numbers<[1], [0], [0], [1], [0, 0, 1, 1], [], []>} : vector<16x102xf32>, vector<102x192xf32>, vector<16x192xf32> -> vector<16x192xf32>
    %14 = arith.addf %10, %13 : vector<16x192xf32>
    %c0_15 = arith.constant 0 : index
    %c2 = arith.constant 2 : index
    %c0_16 = arith.constant 0 : index
    %c0_17 = arith.constant 0 : index
    %15 = vector.load %arg2[%c0_15, %c2, %c0_16, %c0_17] : memref<2x3x102x192xf32, #tpu.memory_space<vmem>>, vector<1x1x102x192xf32>
    %16 = vector.shape_cast %15 : vector<1x1x102x192xf32> to vector<102x192xf32>
    %cst_18 = arith.constant dense<0.000000e+00> : vector<16x192xf32>
    %17 = tpu.matmul %5, %16, %cst_18 {dimension_numbers = #tpu.dot_dimension_numbers<[1], [0], [0], [1], [0, 0, 1, 1], [], []>} : vector<16x102xf32>, vector<102x192xf32>, vector<16x192xf32> -> vector<16x192xf32>
    %18 = arith.addf %14, %17 : vector<16x192xf32>
    %c1_19 = arith.constant 1 : index
    %c0_20 = arith.constant 0 : index
    %c0_21 = arith.constant 0 : index
    %c0_22 = arith.constant 0 : index
    %19 = vector.load %arg2[%c1_19, %c0_20, %c0_21, %c0_22] : memref<2x3x102x192xf32, #tpu.memory_space<vmem>>, vector<1x1x102x192xf32>
    %20 = vector.shape_cast %19 : vector<1x1x102x192xf32> to vector<102x192xf32>
    %cst_23 = arith.constant dense<0.000000e+00> : vector<16x192xf32>
    %21 = tpu.matmul %4, %20, %cst_23 {dimension_numbers = #tpu.dot_dimension_numbers<[1], [0], [0], [1], [0, 0, 1, 1], [], []>} : vector<16x102xf32>, vector<102x192xf32>, vector<16x192xf32> -> vector<16x192xf32>
    %c1_24 = arith.constant 1 : index
    %c1_25 = arith.constant 1 : index
    %c0_26 = arith.constant 0 : index
    %c0_27 = arith.constant 0 : index
    %22 = vector.load %arg2[%c1_24, %c1_25, %c0_26, %c0_27] : memref<2x3x102x192xf32, #tpu.memory_space<vmem>>, vector<1x1x102x192xf32>
    %23 = vector.shape_cast %22 : vector<1x1x102x192xf32> to vector<102x192xf32>
    %cst_28 = arith.constant dense<0.000000e+00> : vector<16x192xf32>
    %24 = tpu.matmul %6, %23, %cst_28 {dimension_numbers = #tpu.dot_dimension_numbers<[1], [0], [0], [1], [0, 0, 1, 1], [], []>} : vector<16x102xf32>, vector<102x192xf32>, vector<16x192xf32> -> vector<16x192xf32>
    %25 = arith.addf %21, %24 : vector<16x192xf32>
    %c1_29 = arith.constant 1 : index
    %c2_30 = arith.constant 2 : index
    %c0_31 = arith.constant 0 : index
    %c0_32 = arith.constant 0 : index
    %26 = vector.load %arg2[%c1_29, %c2_30, %c0_31, %c0_32] : memref<2x3x102x192xf32, #tpu.memory_space<vmem>>, vector<1x1x102x192xf32>
    %27 = vector.shape_cast %26 : vector<1x1x102x192xf32> to vector<102x192xf32>
    %cst_33 = arith.constant dense<0.000000e+00> : vector<16x192xf32>
    %28 = tpu.matmul %5, %27, %cst_33 {dimension_numbers = #tpu.dot_dimension_numbers<[1], [0], [0], [1], [0, 0, 1, 1], [], []>} : vector<16x102xf32>, vector<102x192xf32>, vector<16x192xf32> -> vector<16x192xf32>
    %29 = arith.addf %25, %28 : vector<16x192xf32>
    %c0_34 = arith.constant 0 : index
    %c0_35 = arith.constant 0 : index
    %c0_36 = arith.constant 0 : index
    %c0_37 = arith.constant 0 : index
    %30 = vector.load %arg2[%c0_34, %c0_35, %c0_36, %c0_37] : memref<2x3x102x192xf32, #tpu.memory_space<vmem>>, vector<1x1x102x192xf32>
    %31 = vector.shape_cast %30 : vector<1x1x102x192xf32> to vector<102x192xf32>
    %cst_38 = arith.constant dense<0.000000e+00> : vector<16x192xf32>
    %32 = tpu.matmul %6, %31, %cst_38 {dimension_numbers = #tpu.dot_dimension_numbers<[1], [0], [0], [1], [0, 0, 1, 1], [], []>} : vector<16x102xf32>, vector<102x192xf32>, vector<16x192xf32> -> vector<16x192xf32>
    %c0_39 = arith.constant 0 : index
    %c1_40 = arith.constant 1 : index
    %c0_41 = arith.constant 0 : index
    %c0_42 = arith.constant 0 : index
    %33 = vector.load %arg2[%c0_39, %c1_40, %c0_41, %c0_42] : memref<2x3x102x192xf32, #tpu.memory_space<vmem>>, vector<1x1x102x192xf32>
    %34 = vector.shape_cast %33 : vector<1x1x102x192xf32> to vector<102x192xf32>
    %cst_43 = arith.constant dense<0.000000e+00> : vector<16x192xf32>
    %35 = tpu.matmul %5, %34, %cst_43 {dimension_numbers = #tpu.dot_dimension_numbers<[1], [0], [0], [1], [0, 0, 1, 1], [], []>} : vector<16x102xf32>, vector<102x192xf32>, vector<16x192xf32> -> vector<16x192xf32>
    %36 = arith.addf %32, %35 : vector<16x192xf32>
    %c0_44 = arith.constant 0 : index
    %c2_45 = arith.constant 2 : index
    %c0_46 = arith.constant 0 : index
    %c0_47 = arith.constant 0 : index
    %37 = vector.load %arg2[%c0_44, %c2_45, %c0_46, %c0_47] : memref<2x3x102x192xf32, #tpu.memory_space<vmem>>, vector<1x1x102x192xf32>
    %38 = vector.shape_cast %37 : vector<1x1x102x192xf32> to vector<102x192xf32>
    %cst_48 = arith.constant dense<0.000000e+00> : vector<16x192xf32>
    %39 = tpu.matmul %7, %38, %cst_48 {dimension_numbers = #tpu.dot_dimension_numbers<[1], [0], [0], [1], [0, 0, 1, 1], [], []>} : vector<16x102xf32>, vector<102x192xf32>, vector<16x192xf32> -> vector<16x192xf32>
    %40 = arith.addf %36, %39 : vector<16x192xf32>
    %c1_49 = arith.constant 1 : index
    %c0_50 = arith.constant 0 : index
    %c0_51 = arith.constant 0 : index
    %c0_52 = arith.constant 0 : index
    %41 = vector.load %arg2[%c1_49, %c0_50, %c0_51, %c0_52] : memref<2x3x102x192xf32, #tpu.memory_space<vmem>>, vector<1x1x102x192xf32>
    %42 = vector.shape_cast %41 : vector<1x1x102x192xf32> to vector<102x192xf32>
    %cst_53 = arith.constant dense<0.000000e+00> : vector<16x192xf32>
    %43 = tpu.matmul %6, %42, %cst_53 {dimension_numbers = #tpu.dot_dimension_numbers<[1], [0], [0], [1], [0, 0, 1, 1], [], []>} : vector<16x102xf32>, vector<102x192xf32>, vector<16x192xf32> -> vector<16x192xf32>
    %c1_54 = arith.constant 1 : index
    %c1_55 = arith.constant 1 : index
    %c0_56 = arith.constant 0 : index
    %c0_57 = arith.constant 0 : index
    %44 = vector.load %arg2[%c1_54, %c1_55, %c0_56, %c0_57] : memref<2x3x102x192xf32, #tpu.memory_space<vmem>>, vector<1x1x102x192xf32>
    %45 = vector.shape_cast %44 : vector<1x1x102x192xf32> to vector<102x192xf32>
    %cst_58 = arith.constant dense<0.000000e+00> : vector<16x192xf32>
    %46 = tpu.matmul %5, %45, %cst_58 {dimension_numbers = #tpu.dot_dimension_numbers<[1], [0], [0], [1], [0, 0, 1, 1], [], []>} : vector<16x102xf32>, vector<102x192xf32>, vector<16x192xf32> -> vector<16x192xf32>
    %47 = arith.addf %43, %46 : vector<16x192xf32>
    %c1_59 = arith.constant 1 : index
    %c2_60 = arith.constant 2 : index
    %c0_61 = arith.constant 0 : index
    %c0_62 = arith.constant 0 : index
    %48 = vector.load %arg2[%c1_59, %c2_60, %c0_61, %c0_62] : memref<2x3x102x192xf32, #tpu.memory_space<vmem>>, vector<1x1x102x192xf32>
    %49 = vector.shape_cast %48 : vector<1x1x102x192xf32> to vector<102x192xf32>
    %cst_63 = arith.constant dense<0.000000e+00> : vector<16x192xf32>
    %50 = tpu.matmul %7, %49, %cst_63 {dimension_numbers = #tpu.dot_dimension_numbers<[1], [0], [0], [1], [0, 0, 1, 1], [], []>} : vector<16x102xf32>, vector<102x192xf32>, vector<16x192xf32> -> vector<16x192xf32>
    %51 = arith.addf %47, %50 : vector<16x192xf32>
    %52 = arith.maximumf %18, %29 : vector<16x192xf32>
    %53 = arith.maximumf %40, %51 : vector<16x192xf32>
    %54 = arith.maximumf %52, %53 : vector<16x192xf32>
    %c0_64 = arith.constant 0 : index
    %c0_65 = arith.constant 0 : index
    %55 = vector.load %arg3[%c0_64, %c0_65] : memref<1x192xf32, #tpu.memory_space<vmem>>, vector<1x192xf32>
    %56 = vector.broadcast %55 : vector<1x192xf32> to vector<16x192xf32>
    %57 = arith.addf %54, %56 : vector<16x192xf32>
    %cst_66 = arith.constant 0.000000e+00 : f32
    %58 = vector.broadcast %cst_66 : f32 to vector<16x192xf32>
    %59 = arith.maximumf %57, %58 : vector<16x192xf32>
    %cst_67 = arith.constant 0.000000e+00 : f32
    %60 = vector.broadcast %cst_67 : f32 to vector<1x192xf32>
    %c0_68 = arith.constant 0 : index
    %c0_69 = arith.constant 0 : index
    %61 = vector.load %arg9[%c0_68, %c0_69] : memref<18x192xf32, #tpu.memory_space<vmem>>, vector<1x192xf32>
    tpu.vector_store %arg9[%c0_68, %c0_69], %60 {strides = array<i32>} : memref<18x192xf32, #tpu.memory_space<vmem>>, vector<1x192xf32>,
    %c17 = arith.constant 17 : index
    %c0_70 = arith.constant 0 : index
    %62 = vector.load %arg9[%c17, %c0_70] : memref<18x192xf32, #tpu.memory_space<vmem>>, vector<1x192xf32>
    tpu.vector_store %arg9[%c17, %c0_70], %60 {strides = array<i32>} : memref<18x192xf32, #tpu.memory_space<vmem>>, vector<1x192xf32>,
    %c1_71 = arith.constant 1 : index
    %c0_72 = arith.constant 0 : index
    %63 = vector.load %arg9[%c1_71, %c0_72] : memref<18x192xf32, #tpu.memory_space<vmem>>, vector<16x192xf32>
    tpu.vector_store %arg9[%c1_71, %c0_72], %59 {strides = array<i32>} : memref<18x192xf32, #tpu.memory_space<vmem>>, vector<16x192xf32>,
    %c0_73 = arith.constant 0 : index
    %c0_74 = arith.constant 0 : index
    %64 = vector.load %arg9[%c0_73, %c0_74] : memref<18x192xf32, #tpu.memory_space<vmem>>, vector<16x192xf32>
    %c0_75 = arith.constant 0 : index
    %c0_76 = arith.constant 0 : index
    %c0_77 = arith.constant 0 : index
    %65 = vector.load %arg4[%c0_75, %c0_76, %c0_77] : memref<3x192x512xf32, #tpu.memory_space<vmem>>, vector<1x192x512xf32>
    %66 = vector.shape_cast %65 : vector<1x192x512xf32> to vector<192x512xf32>
    %cst_78 = arith.constant dense<0.000000e+00> : vector<16x512xf32>
    %67 = tpu.matmul %64, %66, %cst_78 {dimension_numbers = #tpu.dot_dimension_numbers<[1], [0], [0], [1], [0, 0, 1, 1], [], []>} : vector<16x192xf32>, vector<192x512xf32>, vector<16x512xf32> -> vector<16x512xf32>
    %c1_79 = arith.constant 1 : index
    %c0_80 = arith.constant 0 : index
    %68 = vector.load %arg9[%c1_79, %c0_80] : memref<18x192xf32, #tpu.memory_space<vmem>>, vector<16x192xf32>
    %c1_81 = arith.constant 1 : index
    %c0_82 = arith.constant 0 : index
    %c0_83 = arith.constant 0 : index
    %69 = vector.load %arg4[%c1_81, %c0_82, %c0_83] : memref<3x192x512xf32, #tpu.memory_space<vmem>>, vector<1x192x512xf32>
    %70 = vector.shape_cast %69 : vector<1x192x512xf32> to vector<192x512xf32>
    %cst_84 = arith.constant dense<0.000000e+00> : vector<16x512xf32>
    %71 = tpu.matmul %68, %70, %cst_84 {dimension_numbers = #tpu.dot_dimension_numbers<[1], [0], [0], [1], [0, 0, 1, 1], [], []>} : vector<16x192xf32>, vector<192x512xf32>, vector<16x512xf32> -> vector<16x512xf32>
    %72 = arith.addf %67, %71 : vector<16x512xf32>
    %c2_85 = arith.constant 2 : index
    %c0_86 = arith.constant 0 : index
    %73 = vector.load %arg9[%c2_85, %c0_86] : memref<18x192xf32, #tpu.memory_space<vmem>>, vector<16x192xf32>
    %c2_87 = arith.constant 2 : index
    %c0_88 = arith.constant 0 : index
    %c0_89 = arith.constant 0 : index
    %74 = vector.load %arg4[%c2_87, %c0_88, %c0_89] : memref<3x192x512xf32, #tpu.memory_space<vmem>>, vector<1x192x512xf32>
    %75 = vector.shape_cast %74 : vector<1x192x512xf32> to vector<192x512xf32>
    %cst_90 = arith.constant dense<0.000000e+00> : vector<16x512xf32>
    %76 = tpu.matmul %73, %75, %cst_90 {dimension_numbers = #tpu.dot_dimension_numbers<[1], [0], [0], [1], [0, 0, 1, 1], [], []>} : vector<16x192xf32>, vector<192x512xf32>, vector<16x512xf32> -> vector<16x512xf32>
    %77 = arith.addf %72, %76 : vector<16x512xf32>
    %c0_91 = arith.constant 0 : index
    %c0_92 = arith.constant 0 : index
    %78 = vector.load %arg5[%c0_91, %c0_92] : memref<1x512xf32, #tpu.memory_space<vmem>>, vector<1x512xf32>
    %79 = vector.broadcast %78 : vector<1x512xf32> to vector<16x512xf32>
    %80 = arith.addf %77, %79 : vector<16x512xf32>
    %cst_93 = arith.constant 0.000000e+00 : f32
    %81 = vector.broadcast %cst_93 : f32 to vector<16x512xf32>
    %82 = arith.maximumf %80, %81 : vector<16x512xf32>
    %c0_94 = arith.constant 0 : index
    %c0_95 = arith.constant 0 : index
    %c0_96 = arith.constant 0 : index
    %83 = vector.load %arg6[%c0_94, %c0_95, %c0_96] : memref<2x16x512xf32, #tpu.memory_space<vmem>>, vector<1x16x512xf32>
    %84 = vector.shape_cast %83 : vector<1x16x512xf32> to vector<16x512xf32>
    %85 = arith.mulf %82, %84 : vector<16x512xf32>
    %cst_97 = arith.constant dense<0.000000e+00> : vector<16xf32>
    %86 = vector.multi_reduction <add>, %85, %cst_97 [1] : vector<16x512xf32> to vector<16xf32>
    %87 = vector.shape_cast %86 : vector<16xf32> to vector<16x1xf32>
    %c1_98 = arith.constant 1 : index
    %c0_99 = arith.constant 0 : index
    %c0_100 = arith.constant 0 : index
    %88 = vector.load %arg6[%c1_98, %c0_99, %c0_100] : memref<2x16x512xf32, #tpu.memory_space<vmem>>, vector<1x16x512xf32>
    %89 = vector.shape_cast %88 : vector<1x16x512xf32> to vector<16x512xf32>
    %90 = arith.mulf %82, %89 : vector<16x512xf32>
    %cst_101 = arith.constant dense<0.000000e+00> : vector<16xf32>
    %91 = vector.multi_reduction <add>, %90, %cst_101 [1] : vector<16x512xf32> to vector<16xf32>
    %92 = vector.shape_cast %91 : vector<16xf32> to vector<16x1xf32>
    %93 = tpu.concatenate %87, %92 in 1 : vector<16x1xf32>, vector<16x1xf32> -> vector<16x2xf32>
    %cst_102 = arith.constant dense<0.000000e+00> : vector<2xf32>
    %94 = vector.multi_reduction <add>, %93, %cst_102 [0] : vector<16x2xf32> to vector<2xf32>
    %95 = vector.shape_cast %94 : vector<2xf32> to vector<1x2xf32>
    %c0_103 = arith.constant 0 : index
    %c0_104 = arith.constant 0 : index
    %96 = vector.load %arg7[%c0_103, %c0_104] : memref<1x2xf32, #tpu.memory_space<vmem>>, vector<1x2xf32>
    %97 = arith.addf %95, %96 : vector<1x2xf32>
    %98 = vector.shape_cast %97 : vector<1x2xf32> to vector<1x1x2xf32>
    %c0_105 = arith.constant 0 : index
    %c0_106 = arith.constant 0 : index
    %c0_107 = arith.constant 0 : index
    %99 = vector.load %arg8[%c0_105, %c0_106, %c0_107] : memref<1x1x2xf32, #tpu.memory_space<vmem>>, vector<1x1x2xf32>
    tpu.vector_store %arg8[%c0_105, %c0_106, %c0_107], %98 {strides = array<i32>} : memref<1x1x2xf32, #tpu.memory_space<vmem>>, vector<1x1x2xf32>,
    return
  }
  func.func @transform_0(%arg0: i32) -> (i32, i32, i32, i32) {
    %c0_i32 = arith.constant 0 : i32
    %c0_i32_0 = arith.constant 0 : i32
    %c0_i32_1 = arith.constant 0 : i32
    %c0_i32_2 = arith.constant 0 : i32
    return %arg0, %c0_i32, %c0_i32_0, %c0_i32_1 : i32, i32, i32, i32
  }
  func.func @transform_1(%arg0: i32) -> (i32, i32, i32, i32) {
    %c0_i32 = arith.constant 0 : i32
    %c0_i32_0 = arith.constant 0 : i32
    %c0_i32_1 = arith.constant 0 : i32
    %c0_i32_2 = arith.constant 0 : i32
    %c0_i32_3 = arith.constant 0 : i32
    return %c0_i32, %c0_i32_0, %c0_i32_1, %c0_i32_2 : i32, i32, i32, i32
  }
  func.func @transform_2(%arg0: i32) -> (i32, i32) {
    %c0_i32 = arith.constant 0 : i32
    %c0_i32_0 = arith.constant 0 : i32
    %c0_i32_1 = arith.constant 0 : i32
    return %c0_i32, %c0_i32_0 : i32, i32
  }
  func.func @transform_3(%arg0: i32) -> (i32, i32, i32) {
    %c0_i32 = arith.constant 0 : i32
    %c0_i32_0 = arith.constant 0 : i32
    %c0_i32_1 = arith.constant 0 : i32
    %c0_i32_2 = arith.constant 0 : i32
    return %c0_i32, %c0_i32_0, %c0_i32_1 : i32, i32, i32
  }
  func.func @transform_4(%arg0: i32) -> (i32, i32) {
    %c0_i32 = arith.constant 0 : i32
    %c0_i32_0 = arith.constant 0 : i32
    %c0_i32_1 = arith.constant 0 : i32
    return %c0_i32, %c0_i32_0 : i32, i32
  }
  func.func @transform_5(%arg0: i32) -> (i32, i32, i32) {
    %c0_i32 = arith.constant 0 : i32
    %c0_i32_0 = arith.constant 0 : i32
    %c0_i32_1 = arith.constant 0 : i32
    %c0_i32_2 = arith.constant 0 : i32
    return %c0_i32, %c0_i32_0, %c0_i32_1 : i32, i32, i32
  }
  func.func @transform_6(%arg0: i32) -> (i32, i32) {
    %c0_i32 = arith.constant 0 : i32
    %c0_i32_0 = arith.constant 0 : i32
    %c0_i32_1 = arith.constant 0 : i32
    return %c0_i32, %c0_i32_0 : i32, i32
  }
  func.func @transform_7(%arg0: i32) -> (i32, i32, i32) {
    %c0_i32 = arith.constant 0 : i32
    %c0_i32_0 = arith.constant 0 : i32
    %c0_i32_1 = arith.constant 0 : i32
    return %arg0, %c0_i32, %c0_i32_0 : i32, i32, i32
  }
}

</mosaic_0001>

<llo_original>
// kernel: convnet_forward.1
$region0: #{convnet_forward.1}
  #allocation0 [shape = 'u32[]', space=smem, size = 0x4, offset = 0x4, fixed_abs, tag = 'smem constant byte address 0x4 - core index']
  #allocation1 [shape = 'u32[144,128]{1,0:T(1,128)}', space=vmem, size = 0x12000, scoped, tag = 'internal scratch']
  #allocation2 [shape = 'f32[18,192]{1,0:T(8,128)}', space=vmem, size = 0x6000, scoped, tag = 'scratch operand']
  %s0 = inlined_call_operand.vmem [shape: f32[2,2,17,102], index: 0, kind: input, shape index: {}]
  %s1 = inlined_call_operand.vmem [shape: f32[2,3,102,192], index: 1, kind: input, shape index: {}]
  %s2 = inlined_call_operand.vmem [shape: f32[1,192], index: 2, kind: input, shape index: {}]
  %s3 = inlined_call_operand.vmem [shape: f32[3,192,512], index: 3, kind: input, shape index: {}]
  %s4 = inlined_call_operand.vmem [shape: f32[1,512], index: 4, kind: input, shape index: {}]
  %s5 = inlined_call_operand.vmem [shape: f32[2,16,512], index: 5, kind: input, shape index: {}]
  %s6 = inlined_call_operand.vmem [shape: f32[1,2], index: 6, kind: input, shape index: {}]
  %s7 = inlined_call_operand.hbm [shape: f32[2,1,2], index: 7, kind: output, shape index: {}]
  %s8 = sld [smem:[#allocation0]]
  $region61: #{convnet_forward.1} parent=0
    _
  %s10 = ssub.s32 1, %s8
  %s11 = scalar_select 0, %s10, %s8
  $region1: #{convnet_forward.1} parent=0
    #allocation3 [shape = 'u8[1024]{0}', space=vmem, size = 0x400, scoped, tag = 'output window, operand 0']
    #allocation4 [shape = 's32[2]{0}', space=sflag, size = 0x8, scoped, tag = 'scoped memory for convnet_forward.1']
    %12 = vsyncpa [#allocation4], 0
    %s13 = scalar_lea.sflag [#allocation4], 1
    %14 = vsyncpa %s13, 0
    loop: start=0, step=1, limit=4
    $region2: #{convnet_forward.1} parent=1 // loop_pre_header
      _
    $region3: #{convnet_forward.1} parent=1 // loop_header
      %s16 = sphi 0, %s20
      %p17 = scmp.ge.s32.totalorder %s16, 4
      %s26 = sphi 0, %s28
      %s29 = sphi 0, %s26
      %s30 = sphi 0, %s29
      %s46 = sphi 0, %s30
      %s50 = sphi 0, %s50
      %s52 = sphi 0, %s50
      %s53 = sphi 0, %s52
      %s67 = sphi 0, %s53
      %s71 = sphi 0, %s71
      %s73 = sphi 0, %s71
      %s74 = sphi 0, %s73
      %s88 = sphi 0, %s74
      %s92 = sphi 0, %s92
      %s94 = sphi 0, %s92
      %s95 = sphi 0, %s94
      %s109 = sphi 0, %s95
      %s113 = sphi 0, %s113
      %s115 = sphi 0, %s113
      %s116 = sphi 0, %s115
      %s130 = sphi 0, %s116
      %s134 = sphi 0, %s134
      %s136 = sphi 0, %s134
      %s137 = sphi 0, %s136
      %s151 = sphi 0, %s137
      %s155 = sphi 0, %s155
      %s157 = sphi 0, %s155
      %s158 = sphi 0, %s157
      %s172 = sphi 0, %s158
      %s178 = sphi 0, %s180
      %s181 = sphi 0, %s178
      %s182 = sphi 0, %s181
      %s198 = sphi 0, %s182
    $region4: #{convnet_forward.1} parent=1 // loop_header_branch
      %19 = sbr.rel (%p17) target = $region8
    $region5: #{convnet_forward.1} parent=1 // loop_body
      %s21 = ssub.s32 %s16, 1
      %s22 = ssub.s32 %s16, 2
      %s23 = sadd.s32 %s16, 1
      %s24 = ssub.s32 %s16, %s23
      %p25 = scmp.eq.s32.totalorder %s24, 0
      %s27 = sadd.s32 %s26, 1
      %s28 = scalar_select %p25, %s26, %s27
      %p31 = pneg %p25
      %p32 = scmp.eq.s32.totalorder %s16, 1
      %p33 = por %p31, %p32
      %p34 = scmp.ne.s32.totalorder %s26, %s29
      %p35 = scmp.eq.s32.totalorder %s16, 0
      %p36 = por %p34, %p35
      %p37 = scmp.ne.s32.totalorder %s26, %s29
      %p38 = scmp.eq.s32.totalorder %s21, 1
      %p39 = por %p37, %p38
      %p40 = scmp.ne.s32.totalorder %s29, %s30
      %p41 = scmp.eq.s32.totalorder %s21, 0
      %p42 = por %p40, %p41
      %p43 = scmp.ne.s32.totalorder %s29, %s30
      %p44 = scmp.eq.s32.totalorder %s22, 1
      %p45 = por %p43, %p44
      %p47 = scmp.ne.s32.totalorder %s30, %s46
      %p48 = scmp.eq.s32.totalorder %s22, 0
      %p49 = por %p47, %p48
      %s51 = sadd.s32 %s50, 1
      %p54 = scmp.eq.s32.totalorder %s16, 1
      %p55 = scmp.ne.s32.totalorder %s50, %s52
      %p56 = scmp.eq.s32.totalorder %s16, 0
      %p57 = por %p55, %p56
      %p58 = scmp.ne.s32.totalorder %s50, %s52
      %p59 = scmp.eq.s32.totalorder %s21, 1
      %p60 = por %p58, %p59
      %p61 = scmp.ne.s32.totalorder %s52, %s53
      %p62 = scmp.eq.s32.totalorder %s21, 0
      %p63 = por %p61, %p62
      %p64 = scmp.ne.s32.totalorder %s52, %s53
      %p65 = scmp.eq.s32.totalorder %s22, 1
      %p66 = por %p64, %p65
      %p68 = scmp.ne.s32.totalorder %s53, %s67
      %p69 = scmp.eq.s32.totalorder %s22, 0
      %p70 = por %p68, %p69
      %s72 = sadd.s32 %s71, 1
      %p75 = scmp.eq.s32.totalorder %s16, 1
      %p76 = scmp.ne.s32.totalorder %s71, %s73
      %p77 = scmp.eq.s32.totalorder %s16, 0
      %p78 = por %p76, %p77
      %p79 = scmp.ne.s32.totalorder %s71, %s73
      %p80 = scmp.eq.s32.totalorder %s21, 1
      %p81 = por %p79, %p80
      %p82 = scmp.ne.s32.totalorder %s73, %s74
      %p83 = scmp.eq.s32.totalorder %s21, 0
      %p84 = por %p82, %p83
      %p85 = scmp.ne.s32.totalorder %s73, %s74
      %p86 = scmp.eq.s32.totalorder %s22, 1
      %p87 = por %p85, %p86
      %p89 = scmp.ne.s32.totalorder %s74, %s88
      %p90 = scmp.eq.s32.totalorder %s22, 0
      %p91 = por %p89, %p90
      %s93 = sadd.s32 %s92, 1
      %p96 = scmp.eq.s32.totalorder %s16, 1
      %p97 = scmp.ne.s32.totalorder %s92, %s94
      %p98 = scmp.eq.s32.totalorder %s16, 0
      %p99 = por %p97, %p98
      %p100 = scmp.ne.s32.totalorder %s92, %s94
      %p101 = scmp.eq.s32.totalorder %s21, 1
      %p102 = por %p100, %p101
      %p103 = scmp.ne.s32.totalorder %s94, %s95
      %p104 = scmp.eq.s32.totalorder %s21, 0
      %p105 = por %p103, %p104
      %p106 = scmp.ne.s32.totalorder %s94, %s95
      %p107 = scmp.eq.s32.totalorder %s22, 1
      %p108 = por %p106, %p107
      %p110 = scmp.ne.s32.totalorder %s95, %s109
      %p111 = scmp.eq.s32.totalorder %s22, 0
      %p112 = por %p110, %p111
      %s114 = sadd.s32 %s113, 1
      %p117 = scmp.eq.s32.totalorder %s16, 1
      %p118 = scmp.ne.s32.totalorder %s113, %s115
      %p119 = scmp.eq.s32.totalorder %s16, 0
      %p120 = por %p118, %p119
      %p121 = scmp.ne.s32.totalorder %s113, %s115
      %p122 = scmp.eq.s32.totalorder %s21, 1
      %p123 = por %p121, %p122
      %p124 = scmp.ne.s32.totalorder %s115, %s116
      %p125 = scmp.eq.s32.totalorder %s21, 0
      %p126 = por %p124, %p125
      %p127 = scmp.ne.s32.totalorder %s115, %s116
      %p128 = scmp.eq.s32.totalorder %s22, 1
      %p129 = por %p127, %p128
      %p131 = scmp.ne.s32.totalorder %s116, %s130
      %p132 = scmp.eq.s32.totalorder %s22, 0
      %p133 = por %p131, %p132
      %s135 = sadd.s32 %s134, 1
      %p138 = scmp.eq.s32.totalorder %s16, 1
      %p139 = scmp.ne.s32.totalorder %s134, %s136
      %p140 = scmp.eq.s32.totalorder %s16, 0
      %p141 = por %p139, %p140
      %p142 = scmp.ne.s32.totalorder %s134, %s136
      %p143 = scmp.eq.s32.totalorder %s21, 1
      %p144 = por %p142, %p143
      %p145 = scmp.ne.s32.totalorder %s136, %s137
      %p146 = scmp.eq.s32.totalorder %s21, 0
      %p147 = por %p145, %p146
      %p148 = scmp.ne.s32.totalorder %s136, %s137
      %p149 = scmp.eq.s32.totalorder %s22, 1
      %p150 = por %p148, %p149
      %p152 = scmp.ne.s32.totalorder %s137, %s151
      %p153 = scmp.eq.s32.totalorder %s22, 0
      %p154 = por %p152, %p153
      %s156 = sadd.s32 %s155, 1
      %p159 = scmp.eq.s32.totalorder %s16, 1
      %p160 = scmp.ne.s32.totalorder %s155, %s157
      %p161 = scmp.eq.s32.totalorder %s16, 0
      %p162 = por %p160, %p161
      %p163 = scmp.ne.s32.totalorder %s155, %s157
      %p164 = scmp.eq.s32.totalorder %s21, 1
      %p165 = por %p163, %p164
      %p166 = scmp.ne.s32.totalorder %s157, %s158
      %p167 = scmp.eq.s32.totalorder %s21, 0
      %p168 = por %p166, %p167
      %p169 = scmp.ne.s32.totalorder %s157, %s158
      %p170 = scmp.eq.s32.totalorder %s22, 1
      %p171 = por %p169, %p170
      %p173 = scmp.ne.s32.totalorder %s158, %s172
      %p174 = scmp.eq.s32.totalorder %s22, 0
      %p175 = por %p173, %p174
      %s176 = ssub.s32 %s16, %s23
      %p177 = scmp.eq.s32.totalorder %s176, 0
      %s179 = sadd.s32 %s178, 1
      %s180 = scalar_select %p177, %s178, %s179
      %p183 = pneg %p177
      %p184 = scmp.eq.s32.totalorder %s16, 1
      %p185 = por %p183, %p184
      %p186 = scmp.ne.s32.totalorder %s178, %s181
      %p187 = scmp.eq.s32.totalorder %s16, 0
      %p188 = por %p186, %p187
      %p189 = scmp.ne.s32.totalorder %s178, %s181
      %p190 = scmp.eq.s32.totalorder %s21, 1
      %p191 = por %p189, %p190
      %p192 = scmp.ne.s32.totalorder %s181, %s182
      %p193 = scmp.eq.s32.totalorder %s21, 0
      %p194 = por %p192, %p193
      %p195 = scmp.ne.s32.totalorder %s181, %s182
      %p196 = scmp.eq.s32.totalorder %s22, 1
      %p197 = por %p195, %p196
      %p199 = scmp.ne.s32.totalorder %s182, %s198
      %p200 = scmp.eq.s32.totalorder %s22, 0
      %p201 = por %p199, %p200
      %p202 = scmp.le.s32.totalorder 1, %s16
      %p203 = scmp.lt.s32.totalorder %s16, 3
      %p204 = pnand %p202, %p203
      %p205 = pneg %p204
      // Predicated region
      $region9: #{convnet_forward.1} parent=5 // pred_check
        _
      $region10: #{convnet_forward.1} parent=5 // pred_check_branch
        %207 = sbr.rel (%p204) target = $region12
      $region11: #{convnet_forward.1} parent=5 // pred_region
        %s208 = ssub.s32 %s16, 1
        // Predicated region
        $region13: #{convnet_forward.1} parent=11 // pred_check
          %p209 = pneg %p63
        $region14: #{convnet_forward.1} parent=11 // pred_check_branch
          %211 = sbr.rel (%p209) target = $region16
        $region15: #{convnet_forward.1} parent=11 // pred_region
          _
        $region16: #{convnet_forward.1} parent=11 // pred_fallthru
          _
        // Predicated region
        $region17: #{convnet_forward.1} parent=11 // pred_check
          %p212 = pneg %p84
        $region18: #{convnet_forward.1} parent=11 // pred_check_branch
          %214 = sbr.rel (%p212) target = $region20
        $region19: #{convnet_forward.1} parent=11 // pred_region
          _
        $region20: #{convnet_forward.1} parent=11 // pred_fallthru
          _
        // Predicated region
        $region21: #{convnet_forward.1} parent=11 // pred_check
          %p215 = pneg %p105
        $region22: #{convnet_forward.1} parent=11 // pred_check_branch
          %217 = sbr.rel (%p215) target = $region24
        $region23: #{convnet_forward.1} parent=11 // pred_region
          _
        $region24: #{convnet_forward.1} parent=11 // pred_fallthru
          _
        // Predicated region
        $region25: #{convnet_forward.1} parent=11 // pred_check
          %p218 = pneg %p126
        $region26: #{convnet_forward.1} parent=11 // pred_check_branch
          %220 = sbr.rel (%p218) target = $region28
        $region27: #{convnet_forward.1} parent=11 // pred_region
          _
        $region28: #{convnet_forward.1} parent=11 // pred_fallthru
          _
        // Predicated region
        $region29: #{convnet_forward.1} parent=11 // pred_check
          %p221 = pneg %p147
        $region30: #{convnet_forward.1} parent=11 // pred_check_branch
          %223 = sbr.rel (%p221) target = $region32
        $region31: #{convnet_forward.1} parent=11 // pred_region
          _
        $region32: #{convnet_forward.1} parent=11 // pred_fallthru
          _
        // Predicated region
        $region33: #{convnet_forward.1} parent=11 // pred_check
          %p224 = pneg %p168
        $region34: #{convnet_forward.1} parent=11 // pred_check_branch
          %226 = sbr.rel (%p224) target = $region36
        $region35: #{convnet_forward.1} parent=11 // pred_region
          _
        $region36: #{convnet_forward.1} parent=11 // pred_fallthru
          _
      $region12: #{convnet_forward.1} parent=5 // pred_fallthru
        _
      %p227 = scmp.lt.s32.totalorder %s16, 2
      // Predicated region
      $region37: #{convnet_forward.1} parent=5 // pred_check
        %p228 = pneg %p227
      $region38: #{convnet_forward.1} parent=5 // pred_check_branch
        %230 = sbr.rel (%p228) target = $region40
      $region39: #{convnet_forward.1} parent=5 // pred_region
        // Predicated region
        $region41: #{convnet_forward.1} parent=39 // pred_check
          %p231 = pneg %p36
        $region42: #{convnet_forward.1} parent=39 // pred_check_branch
          %233 = sbr.rel (%p231) target = $region44
        $region43: #{convnet_forward.1} parent=39 // pred_region
          %p234 = scmp.lt.s32.totalorder %s16, 1
          %s235 = scalar_select %p234, %s16, 1
          %s236 = smul.addr %s235, 6
          %s237 = smul.addr %s236, 8
          %s238 = scalar_lea.vmem %s0, %s237
        $region44: #{convnet_forward.1} parent=39 // pred_fallthru
          _
      $region40: #{convnet_forward.1} parent=5 // pred_fallthru
        _
      %p239 = scmp.le.s32.totalorder 1, %s16
      %p240 = scmp.lt.s32.totalorder %s16, 3
      %p241 = pnand %p239, %p240
      %p242 = pneg %p241
      // Predicated region
      $region45: #{convnet_forward.1} parent=5 // pred_check
        _
      $region46: #{convnet_forward.1} parent=5 // pred_check_branch
        %244 = sbr.rel (%p241) target = $region48
      $region47: #{convnet_forward.1} parent=5 // pred_region
        %s245 = ssub.s32 %s16, 1
        %p246 = scmp.lt.s32.totalorder %s21, 1
        %s247 = scalar_select %p246, %s21, 1
        %s248 = smul.addr %s247, 6
        %s249 = smul.addr %s248, 8
        %s250 = scalar_lea.vmem %s0, %s249
        %p251 = pneg %p42
        %p252 = pneg %p39
        %p253 = pneg %p63
        %p254 = pneg %p60
        %p255 = pneg %p84
        %p256 = pneg %p81
        %p257 = pneg %p105
        %p258 = pneg %p102
        %p259 = pneg %p126
        %p260 = pneg %p123
        %p261 = pneg %p147
        %p262 = pneg %p144
        %p263 = pneg %p168
        %p264 = pneg %p165
        %p265 = pneg %p194
        %p266 = pneg %p191
        %s267 = sand.u32 %s181, 1
        %s268 = scalar_lea.sflag [#allocation4], %s267
        %s269 = sand.u32 %s181, 1
        %s270 = scalar_lea.vmem [#allocation3], %s269
        %p271 = scmp.lt.s32.totalorder %s21, 1
        %s272 = scalar_select %p271, %s21, 1
        %s273 = smul.addr %s272, 6
        %s274 = smul.addr %s273, 8
        %s275 = scalar_lea.vmem %s0, %s274
        %v276 = vld [vmem:[%s275] sm:$0xff]
        %v277 = vld [vmem:[%s275 + $0x8] sm:$0xff]
        %v278 = vld [vmem:[%s275 + $0x10] sm:$0x1]
        %s279 = scalar_lea.vmem %s275, 24
        %v280 = vld [vmem:[%s279] sm:$0xff]
        %v281 = vld [vmem:[%s279 + $0x8] sm:$0xff]
        %v282 = vld [vmem:[%s279 + $0x10] sm:$0x1]
        %v283 = vld [vmem:[%s1] sm:$0xff]
        %v284 = vld [vmem:[%s1 + $0x8] sm:$0xff]
        %v285 = vld [vmem:[%s1 + $0x10] sm:$0xff]
        %v286 = vld [vmem:[%s1 + $0x18] sm:$0xff]
        %v287 = vld [vmem:[%s1 + $0x20] sm:$0xff]
        %v288 = vld [vmem:[%s1 + $0x28] sm:$0xff]
        %v289 = vld [vmem:[%s1 + $0x30] sm:$0xff]
        %v290 = vld [vmem:[%s1 + $0x38] sm:$0xff]
        %v291 = vld [vmem:[%s1 + $0x40] sm:$0xff]
        %v292 = vld [vmem:[%s1 + $0x48] sm:$0xff]
        %v293 = vld [vmem:[%s1 + $0x50] sm:$0xff]
        %v294 = vld [vmem:[%s1 + $0x58] sm:$0xff]
        %v295 = vld [vmem:[%s1 + $0x60] sm:$0xff]
        %v296 = vld [vmem:[%s1 + $0x68] sm:$0xff]
        %v297 = vld [vmem:[%s1 + $0x70] sm:$0xff]
        %v298 = vld [vmem:[%s1 + $0x78] sm:$0xff]
        %v299 = vld [vmem:[%s1 + $0x80] sm:$0xff]
        %v300 = vld [vmem:[%s1 + $0x88] sm:$0xff]
        %v301 = vld [vmem:[%s1 + $0x90] sm:$0xff]
        %v302 = vld [vmem:[%s1 + $0x98] sm:$0xff]
        %v303 = vld [vmem:[%s1 + $0xa0] sm:$0xff]
        %v304 = vld [vmem:[%s1 + $0xa8] sm:$0xff]
        %v305 = vld [vmem:[%s1 + $0xb0] sm:$0xff]
        %v306 = vld [vmem:[%s1 + $0xb8] sm:$0xff]
        %v307 = vld [vmem:[%s1 + $0xc0] sm:$0x3f]
        %v308 = vld [vmem:[%s1 + $0xc8] sm:$0x3f]
        %s309 = scalar_lea.vmem %s1, 208
        %v310 = vld [vmem:[%s309] sm:$0xff]
        %v311 = vld [vmem:[%s309 + $0x8] sm:$0xff]
        %v312 = vld [vmem:[%s309 + $0x10] sm:$0xff]
        %v313 = vld [vmem:[%s309 + $0x18] sm:$0xff]
        %v314 = vld [vmem:[%s309 + $0x20] sm:$0xff]
        %v315 = vld [vmem:[%s309 + $0x28] sm:$0xff]
        %v316 = vld [vmem:[%s309 + $0x30] sm:$0xff]
        %v317 = vld [vmem:[%s309 + $0x38] sm:$0xff]
        %v318 = vld [vmem:[%s309 + $0x40] sm:$0xff]
        %v319 = vld [vmem:[%s309 + $0x48] sm:$0xff]
        %v320 = vld [vmem:[%s309 + $0x50] sm:$0xff]
        %v321 = vld [vmem:[%s309 + $0x58] sm:$0xff]
        %v322 = vld [vmem:[%s309 + $0x60] sm:$0xff]
        %v323 = vld [vmem:[%s309 + $0x68] sm:$0xff]
        %v324 = vld [vmem:[%s309 + $0x70] sm:$0xff]
        %v325 = vld [vmem:[%s309 + $0x78] sm:$0xff]
        %v326 = vld [vmem:[%s309 + $0x80] sm:$0xff]
        %v327 = vld [vmem:[%s309 + $0x88] sm:$0xff]
        %v328 = vld [vmem:[%s309 + $0x90] sm:$0xff]
        %v329 = vld [vmem:[%s309 + $0x98] sm:$0xff]
        %v330 = vld [vmem:[%s309 + $0xa0] sm:$0xff]
        %v331 = vld [vmem:[%s309 + $0xa8] sm:$0xff]
        %v332 = vld [vmem:[%s309 + $0xb0] sm:$0xff]
        %v333 = vld [vmem:[%s309 + $0xb8] sm:$0xff]
        %v334 = vld [vmem:[%s309 + $0xc0] sm:$0x3f]
        %v335 = vld [vmem:[%s309 + $0xc8] sm:$0x3f]
        %vm336 = vcmask 834560
        %v338 = vsel %vm336, %v280, 0
        %v341 = vsel %vm336, %v281, 0
        %vm343 = vcmask 1045504
        %v345 = vsel %vm343, %v334, 0
        %v348 = vsel %vm343, %v335, 0
        %350 = vmatprep.subr.mxu0 %v311
        %351 = vmatpush1.msra.mxu0 %v310
        %352 = vmatprep.subr.mxu0 %v313
        %353 = vmatpush1.msra.mxu0 %v312
        %354 = vmatprep.subr.mxu0 %v315
        %355 = vmatpush1.msra.mxu0 %v314
        %356 = vmatprep.subr.mxu0 %v317
        %357 = vmatpush1.msra.mxu0 %v316
        %358 = vmatprep.subr.mxu0 %v319
        %359 = vmatpush1.msra.mxu0 %v318
        %360 = vmatprep.subr.mxu0 %v321
        %361 = vmatpush1.msra.mxu0 %v320
        %362 = vmatprep.subr.mxu0 %v323
        %363 = vmatpush1.msra.mxu0 %v322
        %364 = vmatprep.subr.mxu0 %v325
        %365 = vmatpush1.msra.mxu0 %v324
        %366 = vmatprep.subr.mxu0 %v327
        %367 = vmatpush1.msra.mxu0 %v326
        %368 = vmatprep.subr.mxu0 %v329
        %369 = vmatpush1.msra.mxu0 %v328
        %370 = vmatprep.subr.mxu0 %v331
        %371 = vmatpush1.msra.mxu0 %v330
        %372 = vmatprep.subr.mxu0 %v333
        %373 = vmatpush1.msra.mxu0 %v332
        %374 = vmatprep.subr.mxu0 %v348
        %375 = vmatpush1.msra.mxu0 %v345
        %376 = vmatprep.subr.mxu0 0.0
        %377 = vmatpush1.msra.mxu0 0.0
        %378 = vmatprep.subr.mxu0 0.0
        %379 = vmatpush1.msra.mxu0 0.0
        %380 = vmatprep.subr.mxu0 0.0
        %381 = vmatpush1.msra.mxu0 0.0
        %382 = vmatprep.subr.mxu0 0.0
        %383 = vmatpush1.msra.mxu0 0.0
        %384 = vmatprep.subr.mxu0 0.0
        %385 = vmatpush1.msra.mxu0 0.0
        %386 = vmatprep.subr.mxu0 0.0
        %387 = vmatpush1.msra.mxu0 0.0
        %388 = vmatprep.subr.mxu0 0.0
        %389 = vmatpush1.msra.mxu0 0.0
        %390 = vmatprep.subr.mxu0 0.0
        %391 = vmatpush1.msra.mxu0 0.0
        %392 = vmatprep.subr.mxu0 0.0
        %393 = vmatpush1.msra.mxu0 0.0
        %394 = vmatprep.subr.mxu0 0.0
        %395 = vmatpush1.msra.mxu0 0.0
        %396 = vmatprep.subr.mxu0 0.0
        %397 = vmatpush1.msra.mxu0 0.0
        %398 = vmatprep.subr.mxu0 0.0
        %399 = vmatpush1.msra.mxu0 0.0
        %400 = vmatprep.subr.mxu0 0.0
        %401 = vmatpush1.msra.mxu0 0.0
        %402 = vmatprep.subr.mxu0 0.0
        %403 = vmatpush1.msra.mxu0 0.0
        %404 = vmatprep.subr.mxu0 0.0
        %405 = vmatpush1.msra.mxu0 0.0
        %406 = vmatprep.subr.mxu0 0.0
        %407 = vmatpush1.msra.mxu0 0.0
        %408 = vmatprep.subr.mxu0 0.0
        %409 = vmatpush1.msra.mxu0 0.0
        %410 = vmatprep.subr.mxu0 0.0
        %411 = vmatpush1.msra.mxu0 0.0
        %412 = vmatprep.subr.mxu0 0.0
        %413 = vmatpush1.msra.mxu0 0.0
        %414 = vmatprep.mubr.f32.mxu0 0.0
        %415 = vmatmul.mubr.f32.gmra.mrb[0].mxu0 %v338
        %v416 = vpop.f32.mrb[0].mxu0
        %v417 = vadd.f32 0.0, %v416
        %v418 = vpop.f32.mrb[0].mxu0
        %v419 = vadd.f32 0.0, %v418
        %420 = vmatprep.mubr.f32.mxu0 0.0
        %421 = vmatmul.mubr.f32.gmra.mrb[0].mxu0 %v341
        %v422 = vpop.f32.mrb[0].mxu0
        %v423 = vadd.f32 0.0, %v422
        %v424 = vpop.f32.mrb[0].mxu0
        %v425 = vadd.f32 0.0, %v424
        %426 = vdwg.mxu0
        %v428 = vsel %vm336, %v276, 0
        %v431 = vsel %vm336, %v277, 0
        %v434 = vsel %vm343, %v307, 0
        %v437 = vsel %vm343, %v308, 0
        %439 = vmatprep.subr.mxu0 %v284
        %440 = vmatpush1.msra.mxu0 %v283
        %441 = vmatprep.subr.mxu0 %v286
        %442 = vmatpush1.msra.mxu0 %v285
        %443 = vmatprep.subr.mxu0 %v288
        %444 = vmatpush1.msra.mxu0 %v287
        %445 = vmatprep.subr.mxu0 %v290
        %446 = vmatpush1.msra.mxu0 %v289
        %447 = vmatprep.subr.mxu0 %v292
        %448 = vmatpush1.msra.mxu0 %v291
        %449 = vmatprep.subr.mxu0 %v294
        %450 = vmatpush1.msra.mxu0 %v293
        %451 = vmatprep.subr.mxu0 %v296
        %452 = vmatpush1.msra.mxu0 %v295
        %453 = vmatprep.subr.mxu0 %v298
        %454 = vmatpush1.msra.mxu0 %v297
        %455 = vmatprep.subr.mxu0 %v300
        %456 = vmatpush1.msra.mxu0 %v299
        %457 = vmatprep.subr.mxu0 %v302
        %458 = vmatpush1.msra.mxu0 %v301
        %459 = vmatprep.subr.mxu0 %v304
        %460 = vmatpush1.msra.mxu0 %v303
        %461 = vmatprep.subr.mxu0 %v306
        %462 = vmatpush1.msra.mxu0 %v305
        %463 = vmatprep.subr.mxu0 %v437
        %464 = vmatpush1.msra.mxu0 %v434
        %465 = vmatprep.subr.mxu0 0.0
        %466 = vmatpush1.msra.mxu0 0.0
        %467 = vmatprep.subr.mxu0 0.0
        %468 = vmatpush1.msra.mxu0 0.0
        %469 = vmatprep.subr.mxu0 0.0
        %470 = vmatpush1.msra.mxu0 0.0
        %471 = vmatprep.subr.mxu0 0.0
        %472 = vmatpush1.msra.mxu0 0.0
        %473 = vmatprep.subr.mxu0 0.0
        %474 = vmatpush1.msra.mxu0 0.0
        %475 = vmatprep.subr.mxu0 0.0
        %476 = vmatpush1.msra.mxu0 0.0
        %477 = vmatprep.subr.mxu0 0.0
        %478 = vmatpush1.msra.mxu0 0.0
        %479 = vmatprep.subr.mxu0 0.0
        %480 = vmatpush1.msra.mxu0 0.0
        %481 = vmatprep.subr.mxu0 0.0
        %482 = vmatpush1.msra.mxu0 0.0
        %483 = vmatprep.subr.mxu0 0.0
        %484 = vmatpush1.msra.mxu0 0.0
        %485 = vmatprep.subr.mxu0 0.0
        %486 = vmatpush1.msra.mxu0 0.0
        %487 = vmatprep.subr.mxu0 0.0
        %488 = vmatpush1.msra.mxu0 0.0
        %489 = vmatprep.subr.mxu0 0.0
        %490 = vmatpush1.msra.mxu0 0.0
        %491 = vmatprep.subr.mxu0 0.0
        %492 = vmatpush1.msra.mxu0 0.0
        %493 = vmatprep.subr.mxu0 0.0
        %494 = vmatpush1.msra.mxu0 0.0
        %495 = vmatprep.subr.mxu0 0.0
        %496 = vmatpush1.msra.mxu0 0.0
        %497 = vmatprep.subr.mxu0 0.0
        %498 = vmatpush1.msra.mxu0 0.0
        %499 = vmatprep.subr.mxu0 0.0
        %500 = vmatpush1.msra.mxu0 0.0
        %501 = vmatprep.subr.mxu0 0.0
        %502 = vmatpush1.msra.mxu0 0.0
        %503 = vmatprep.mubr.f32.mxu0 0.0
        %504 = vmatmul.mubr.f32.gmra.mrb[0].mxu0 %v428
        %v505 = vpop.f32.mrb[0].mxu0
        %v506 = vadd.f32 %v417, %v505
        %v507 = vpop.f32.mrb[0].mxu0
        %v508 = vadd.f32 %v419, %v507
        %509 = vmatprep.mubr.f32.mxu0 0.0
        %510 = vmatmul.mubr.f32.gmra.mrb[0].mxu0 %v431
        %v511 = vpop.f32.mrb[0].mxu0
        %v512 = vadd.f32 %v423, %v511
        %v513 = vpop.f32.mrb[0].mxu0
        %v514 = vadd.f32 %v425, %v513
        %515 = vdwg.mxu0
        %s516 = scalar_lea.vmem %s1, 416
        %v517 = vld [vmem:[%s516] sm:$0xff]
        %v518 = vld [vmem:[%s516 + $0x8] sm:$0xff]
        %v519 = vld [vmem:[%s516 + $0x10] sm:$0xff]
        %v520 = vld [vmem:[%s516 + $0x18] sm:$0xff]
        %v521 = vld [vmem:[%s516 + $0x20] sm:$0xff]
        %v522 = vld [vmem:[%s516 + $0x28] sm:$0xff]
        %v523 = vld [vmem:[%s516 + $0x30] sm:$0xff]
        %v524 = vld [vmem:[%s516 + $0x38] sm:$0xff]
        %v525 = vld [vmem:[%s516 + $0x40] sm:$0xff]
        %v526 = vld [vmem:[%s516 + $0x48] sm:$0xff]
        %v527 = vld [vmem:[%s516 + $0x50] sm:$0xff]
        %v528 = vld [vmem:[%s516 + $0x58] sm:$0xff]
        %v529 = vld [vmem:[%s516 + $0x60] sm:$0xff]
        %v530 = vld [vmem:[%s516 + $0x68] sm:$0xff]
        %v531 = vld [vmem:[%s516 + $0x70] sm:$0xff]
        %v532 = vld [vmem:[%s516 + $0x78] sm:$0xff]
        %v533 = vld [vmem:[%s516 + $0x80] sm:$0xff]
        %v534 = vld [vmem:[%s516 + $0x88] sm:$0xff]
        %v535 = vld [vmem:[%s516 + $0x90] sm:$0xff]
        %v536 = vld [vmem:[%s516 + $0x98] sm:$0xff]
        %v537 = vld [vmem:[%s516 + $0xa0] sm:$0xff]
        %v538 = vld [vmem:[%s516 + $0xa8] sm:$0xff]
        %v539 = vld [vmem:[%s516 + $0xb0] sm:$0xff]
        %v540 = vld [vmem:[%s516 + $0xb8] sm:$0xff]
        %v541 = vld [vmem:[%s516 + $0xc0] sm:$0x3f]
        %v542 = vld [vmem:[%s516 + $0xc8] sm:$0x3f]
        %vm544 = vcmask 1046528
        %v545 = vrot.slane %v276, 1
        %v546 = vrot.slane %v277, 1
        %v547 = vsel %vm544, %v545, %v546
        %v548 = vrot.slane %v278, 1
        %v549 = vsel %vm544, %v546, %v548
        %v550 = vsel %vm336, %v547, 0
        %v552 = vsel %vm336, %v549, 0
        %v555 = vsel %vm343, %v541, 0
        %v558 = vsel %vm343, %v542, 0
        %560 = vmatprep.subr.mxu0 %v518
        %561 = vmatpush1.msra.mxu0 %v517
        %562 = vmatprep.subr.mxu0 %v520
        %563 = vmatpush1.msra.mxu0 %v519
        %564 = vmatprep.subr.mxu0 %v522
        %565 = vmatpush1.msra.mxu0 %v521
        %566 = vmatprep.subr.mxu0 %v524
        %567 = vmatpush1.msra.mxu0 %v523
        %568 = vmatprep.subr.mxu0 %v526
        %569 = vmatpush1.msra.mxu0 %v525
        %570 = vmatprep.subr.mxu0 %v528
        %571 = vmatpush1.msra.mxu0 %v527
        %572 = vmatprep.subr.mxu0 %v530
        %573 = vmatpush1.msra.mxu0 %v529
        %574 = vmatprep.subr.mxu0 %v532
        %575 = vmatpush1.msra.mxu0 %v531
        %576 = vmatprep.subr.mxu0 %v534
        %577 = vmatpush1.msra.mxu0 %v533
        %578 = vmatprep.subr.mxu0 %v536
        %579 = vmatpush1.msra.mxu0 %v535
        %580 = vmatprep.subr.mxu0 %v538
        %581 = vmatpush1.msra.mxu0 %v537
        %582 = vmatprep.subr.mxu0 %v540
        %583 = vmatpush1.msra.mxu0 %v539
        %584 = vmatprep.subr.mxu0 %v558
        %585 = vmatpush1.msra.mxu0 %v555
        %586 = vmatprep.subr.mxu0 0.0
        %587 = vmatpush1.msra.mxu0 0.0
        %588 = vmatprep.subr.mxu0 0.0
        %589 = vmatpush1.msra.mxu0 0.0
        %590 = vmatprep.subr.mxu0 0.0
        %591 = vmatpush1.msra.mxu0 0.0
        %592 = vmatprep.subr.mxu0 0.0
        %593 = vmatpush1.msra.mxu0 0.0
        %594 = vmatprep.subr.mxu0 0.0
        %595 = vmatpush1.msra.mxu0 0.0
        %596 = vmatprep.subr.mxu0 0.0
        %597 = vmatpush1.msra.mxu0 0.0
        %598 = vmatprep.subr.mxu0 0.0
        %599 = vmatpush1.msra.mxu0 0.0
        %600 = vmatprep.subr.mxu0 0.0
        %601 = vmatpush1.msra.mxu0 0.0
        %602 = vmatprep.subr.mxu0 0.0
        %603 = vmatpush1.msra.mxu0 0.0
        %604 = vmatprep.subr.mxu0 0.0
        %605 = vmatpush1.msra.mxu0 0.0
        %606 = vmatprep.subr.mxu0 0.0
        %607 = vmatpush1.msra.mxu0 0.0
        %608 = vmatprep.subr.mxu0 0.0
        %609 = vmatpush1.msra.mxu0 0.0
        %610 = vmatprep.subr.mxu0 0.0
        %611 = vmatpush1.msra.mxu0 0.0
        %612 = vmatprep.subr.mxu0 0.0
        %613 = vmatpush1.msra.mxu0 0.0
        %614 = vmatprep.subr.mxu0 0.0
        %615 = vmatpush1.msra.mxu0 0.0
        %616 = vmatprep.subr.mxu0 0.0
        %617 = vmatpush1.msra.mxu0 0.0
        %618 = vmatprep.subr.mxu0 0.0
        %619 = vmatpush1.msra.mxu0 0.0
        %620 = vmatprep.subr.mxu0 0.0
        %621 = vmatpush1.msra.mxu0 0.0
        %622 = vmatprep.subr.mxu0 0.0
        %623 = vmatpush1.msra.mxu0 0.0
        %624 = vmatprep.mubr.f32.mxu0 0.0
        %625 = vmatmul.mubr.f32.gmra.mrb[0].mxu0 %v550
        %v626 = vpop.f32.mrb[0].mxu0
        %v627 = vadd.f32 0.0, %v626
        %v628 = vpop.f32.mrb[0].mxu0
        %v629 = vadd.f32 0.0, %v628
        %630 = vmatprep.mubr.f32.mxu0 0.0
        %631 = vmatmul.mubr.f32.gmra.mrb[0].mxu0 %v552
        %v632 = vpop.f32.mrb[0].mxu0
        %v633 = vadd.f32 0.0, %v632
        %v634 = vpop.f32.mrb[0].mxu0
        %v635 = vadd.f32 0.0, %v634
        %636 = vdwg.mxu0
        %v637 = vadd.f32 %v506, %v627
        %v638 = vadd.f32 %v508, %v629
        %v639 = vadd.f32 %v512, %v633
        %v640 = vadd.f32 %v514, %v635
        %s641 = scalar_lea.vmem %s1, 624
        %v642 = vld [vmem:[%s641] sm:$0xff]
        %v643 = vld [vmem:[%s641 + $0x8] sm:$0xff]
        %v644 = vld [vmem:[%s641 + $0x10] sm:$0xff]
        %v645 = vld [vmem:[%s641 + $0x18] sm:$0xff]
        %v646 = vld [vmem:[%s641 + $0x20] sm:$0xff]
        %v647 = vld [vmem:[%s641 + $0x28] sm:$0xff]
        %v648 = vld [vmem:[%s641 + $0x30] sm:$0xff]
        %v649 = vld [vmem:[%s641 + $0x38] sm:$0xff]
        %v650 = vld [vmem:[%s641 + $0x40] sm:$0xff]
        %v651 = vld [vmem:[%s641 + $0x48] sm:$0xff]
        %v652 = vld [vmem:[%s641 + $0x50] sm:$0xff]
        %v653 = vld [vmem:[%s641 + $0x58] sm:$0xff]
        %v654 = vld [vmem:[%s641 + $0x60] sm:$0xff]
        %v655 = vld [vmem:[%s641 + $0x68] sm:$0xff]
        %v656 = vld [vmem:[%s641 + $0x70] sm:$0xff]
        %v657 = vld [vmem:[%s641 + $0x78] sm:$0xff]
        %v658 = vld [vmem:[%s641 + $0x80] sm:$0xff]
        %v659 = vld [vmem:[%s641 + $0x88] sm:$0xff]
        %v660 = vld [vmem:[%s641 + $0x90] sm:$0xff]
        %v661 = vld [vmem:[%s641 + $0x98] sm:$0xff]
        %v662 = vld [vmem:[%s641 + $0xa0] sm:$0xff]
        %v663 = vld [vmem:[%s641 + $0xa8] sm:$0xff]
        %v664 = vld [vmem:[%s641 + $0xb0] sm:$0xff]
        %v665 = vld [vmem:[%s641 + $0xb8] sm:$0xff]
        %v666 = vld [vmem:[%s641 + $0xc0] sm:$0x3f]
        %v667 = vld [vmem:[%s641 + $0xc8] sm:$0x3f]
        %s668 = scalar_lea.vmem %s1, 832
        %v669 = vld [vmem:[%s668] sm:$0xff]
        %v670 = vld [vmem:[%s668 + $0x8] sm:$0xff]
        %v671 = vld [vmem:[%s668 + $0x10] sm:$0xff]
        %v672 = vld [vmem:[%s668 + $0x18] sm:$0xff]
        %v673 = vld [vmem:[%s668 + $0x20] sm:$0xff]
        %v674 = vld [vmem:[%s668 + $0x28] sm:$0xff]
        %v675 = vld [vmem:[%s668 + $0x30] sm:$0xff]
        %v676 = vld [vmem:[%s668 + $0x38] sm:$0xff]
        %v677 = vld [vmem:[%s668 + $0x40] sm:$0xff]
        %v678 = vld [vmem:[%s668 + $0x48] sm:$0xff]
        %v679 = vld [vmem:[%s668 + $0x50] sm:$0xff]
        %v680 = vld [vmem:[%s668 + $0x58] sm:$0xff]
        %v681 = vld [vmem:[%s668 + $0x60] sm:$0xff]
        %v682 = vld [vmem:[%s668 + $0x68] sm:$0xff]
        %v683 = vld [vmem:[%s668 + $0x70] sm:$0xff]
        %v684 = vld [vmem:[%s668 + $0x78] sm:$0xff]
        %v685 = vld [vmem:[%s668 + $0x80] sm:$0xff]
        %v686 = vld [vmem:[%s668 + $0x88] sm:$0xff]
        %v687 = vld [vmem:[%s668 + $0x90] sm:$0xff]
        %v688 = vld [vmem:[%s668 + $0x98] sm:$0xff]
        %v689 = vld [vmem:[%s668 + $0xa0] sm:$0xff]
        %v690 = vld [vmem:[%s668 + $0xa8] sm:$0xff]
        %v691 = vld [vmem:[%s668 + $0xb0] sm:$0xff]
        %v692 = vld [vmem:[%s668 + $0xb8] sm:$0xff]
        %v693 = vld [vmem:[%s668 + $0xc0] sm:$0x3f]
        %v694 = vld [vmem:[%s668 + $0xc8] sm:$0x3f]
        %v696 = vsel %vm343, %v693, 0
        %v699 = vsel %vm343, %v694, 0
        %701 = vmatprep.subr.mxu0 %v670
        %702 = vmatpush1.msra.mxu0 %v669
        %703 = vmatprep.subr.mxu0 %v672
        %704 = vmatpush1.msra.mxu0 %v671
        %705 = vmatprep.subr.mxu0 %v674
        %706 = vmatpush1.msra.mxu0 %v673
        %707 = vmatprep.subr.mxu0 %v676
        %708 = vmatpush1.msra.mxu0 %v675
        %709 = vmatprep.subr.mxu0 %v678
        %710 = vmatpush1.msra.mxu0 %v677
        %711 = vmatprep.subr.mxu0 %v680
        %712 = vmatpush1.msra.mxu0 %v679
        %713 = vmatprep.subr.mxu0 %v682
        %714 = vmatpush1.msra.mxu0 %v681
        %715 = vmatprep.subr.mxu0 %v684
        %716 = vmatpush1.msra.mxu0 %v683
        %717 = vmatprep.subr.mxu0 %v686
        %718 = vmatpush1.msra.mxu0 %v685
        %719 = vmatprep.subr.mxu0 %v688
        %720 = vmatpush1.msra.mxu0 %v687
        %721 = vmatprep.subr.mxu0 %v690
        %722 = vmatpush1.msra.mxu0 %v689
        %723 = vmatprep.subr.mxu0 %v692
        %724 = vmatpush1.msra.mxu0 %v691
        %725 = vmatprep.subr.mxu0 %v699
        %726 = vmatpush1.msra.mxu0 %v696
        %727 = vmatprep.subr.mxu0 0.0
        %728 = vmatpush1.msra.mxu0 0.0
        %729 = vmatprep.subr.mxu0 0.0
        %730 = vmatpush1.msra.mxu0 0.0
        %731 = vmatprep.subr.mxu0 0.0
        %732 = vmatpush1.msra.mxu0 0.0
        %733 = vmatprep.subr.mxu0 0.0
        %734 = vmatpush1.msra.mxu0 0.0
        %735 = vmatprep.subr.mxu0 0.0
        %736 = vmatpush1.msra.mxu0 0.0
        %737 = vmatprep.subr.mxu0 0.0
        %738 = vmatpush1.msra.mxu0 0.0
        %739 = vmatprep.subr.mxu0 0.0
        %740 = vmatpush1.msra.mxu0 0.0
        %741 = vmatprep.subr.mxu0 0.0
        %742 = vmatpush1.msra.mxu0 0.0
        %743 = vmatprep.subr.mxu0 0.0
        %744 = vmatpush1.msra.mxu0 0.0
        %745 = vmatprep.subr.mxu0 0.0
        %746 = vmatpush1.msra.mxu0 0.0
        %747 = vmatprep.subr.mxu0 0.0
        %748 = vmatpush1.msra.mxu0 0.0
        %749 = vmatprep.subr.mxu0 0.0
        %750 = vmatpush1.msra.mxu0 0.0
        %751 = vmatprep.subr.mxu0 0.0
        %752 = vmatpush1.msra.mxu0 0.0
        %753 = vmatprep.subr.mxu0 0.0
        %754 = vmatpush1.msra.mxu0 0.0
        %755 = vmatprep.subr.mxu0 0.0
        %756 = vmatpush1.msra.mxu0 0.0
        %757 = vmatprep.subr.mxu0 0.0
        %758 = vmatpush1.msra.mxu0 0.0
        %759 = vmatprep.subr.mxu0 0.0
        %760 = vmatpush1.msra.mxu0 0.0
        %761 = vmatprep.subr.mxu0 0.0
        %762 = vmatpush1.msra.mxu0 0.0
        %763 = vmatprep.subr.mxu0 0.0
        %764 = vmatpush1.msra.mxu0 0.0
        %765 = vmatprep.mubr.f32.mxu0 0.0
        %766 = vmatmul.mubr.f32.gmra.mrb[0].mxu0 %v338
        %v767 = vpop.f32.mrb[0].mxu0
        %v768 = vadd.f32 0.0, %v767
        %v769 = vpop.f32.mrb[0].mxu0
        %v770 = vadd.f32 0.0, %v769
        %771 = vmatprep.mubr.f32.mxu0 0.0
        %772 = vmatmul.mubr.f32.gmra.mrb[0].mxu0 %v341
        %v773 = vpop.f32.mrb[0].mxu0
        %v774 = vadd.f32 0.0, %v773
        %v775 = vpop.f32.mrb[0].mxu0
        %v776 = vadd.f32 0.0, %v775
        %777 = vdwg.mxu0
        %v779 = vsel %vm343, %v666, 0
        %v782 = vsel %vm343, %v667, 0
        %784 = vmatprep.subr.mxu0 %v643
        %785 = vmatpush1.msra.mxu0 %v642
        %786 = vmatprep.subr.mxu0 %v645
        %787 = vmatpush1.msra.mxu0 %v644
        %788 = vmatprep.subr.mxu0 %v647
        %789 = vmatpush1.msra.mxu0 %v646
        %790 = vmatprep.subr.mxu0 %v649
        %791 = vmatpush1.msra.mxu0 %v648
        %792 = vmatprep.subr.mxu0 %v651
        %793 = vmatpush1.msra.mxu0 %v650
        %794 = vmatprep.subr.mxu0 %v653
        %795 = vmatpush1.msra.mxu0 %v652
        %796 = vmatprep.subr.mxu0 %v655
        %797 = vmatpush1.msra.mxu0 %v654
        %798 = vmatprep.subr.mxu0 %v657
        %799 = vmatpush1.msra.mxu0 %v656
        %800 = vmatprep.subr.mxu0 %v659
        %801 = vmatpush1.msra.mxu0 %v658
        %802 = vmatprep.subr.mxu0 %v661
        %803 = vmatpush1.msra.mxu0 %v660
        %804 = vmatprep.subr.mxu0 %v663
        %805 = vmatpush1.msra.mxu0 %v662
        %806 = vmatprep.subr.mxu0 %v665
        %807 = vmatpush1.msra.mxu0 %v664
        %808 = vmatprep.subr.mxu0 %v782
        %809 = vmatpush1.msra.mxu0 %v779
        %810 = vmatprep.subr.mxu0 0.0
        %811 = vmatpush1.msra.mxu0 0.0
        %812 = vmatprep.subr.mxu0 0.0
        %813 = vmatpush1.msra.mxu0 0.0
        %814 = vmatprep.subr.mxu0 0.0
        %815 = vmatpush1.msra.mxu0 0.0
        %816 = vmatprep.subr.mxu0 0.0
        %817 = vmatpush1.msra.mxu0 0.0
        %818 = vmatprep.subr.mxu0 0.0
        %819 = vmatpush1.msra.mxu0 0.0
        %820 = vmatprep.subr.mxu0 0.0
        %821 = vmatpush1.msra.mxu0 0.0
        %822 = vmatprep.subr.mxu0 0.0
        %823 = vmatpush1.msra.mxu0 0.0
        %824 = vmatprep.subr.mxu0 0.0
        %825 = vmatpush1.msra.mxu0 0.0
        %826 = vmatprep.subr.mxu0 0.0
        %827 = vmatpush1.msra.mxu0 0.0
        %828 = vmatprep.subr.mxu0 0.0
        %829 = vmatpush1.msra.mxu0 0.0
        %830 = vmatprep.subr.mxu0 0.0
        %831 = vmatpush1.msra.mxu0 0.0
        %832 = vmatprep.subr.mxu0 0.0
        %833 = vmatpush1.msra.mxu0 0.0
        %834 = vmatprep.subr.mxu0 0.0
        %835 = vmatpush1.msra.mxu0 0.0
        %836 = vmatprep.subr.mxu0 0.0
        %837 = vmatpush1.msra.mxu0 0.0
        %838 = vmatprep.subr.mxu0 0.0
        %839 = vmatpush1.msra.mxu0 0.0
        %840 = vmatprep.subr.mxu0 0.0
        %841 = vmatpush1.msra.mxu0 0.0
        %842 = vmatprep.subr.mxu0 0.0
        %843 = vmatpush1.msra.mxu0 0.0
        %844 = vmatprep.subr.mxu0 0.0
        %845 = vmatpush1.msra.mxu0 0.0
        %846 = vmatprep.subr.mxu0 0.0
        %847 = vmatpush1.msra.mxu0 0.0
        %848 = vmatprep.mubr.f32.mxu0 0.0
        %849 = vmatmul.mubr.f32.gmra.mrb[0].mxu0 %v428
        %v850 = vpop.f32.mrb[0].mxu0
        %v851 = vadd.f32 %v768, %v850
        %v852 = vpop.f32.mrb[0].mxu0
        %v853 = vadd.f32 %v770, %v852
        %854 = vmatprep.mubr.f32.mxu0 0.0
        %855 = vmatmul.mubr.f32.gmra.mrb[0].mxu0 %v431
        %v856 = vpop.f32.mrb[0].mxu0
        %v857 = vadd.f32 %v774, %v856
        %v858 = vpop.f32.mrb[0].mxu0
        %v859 = vadd.f32 %v776, %v858
        %860 = vdwg.mxu0
        %s861 = scalar_lea.vmem %s1, 1040
        %v862 = vld [vmem:[%s861] sm:$0xff]
        %v863 = vld [vmem:[%s861 + $0x8] sm:$0xff]
        %v864 = vld [vmem:[%s861 + $0x10] sm:$0xff]
        %v865 = vld [vmem:[%s861 + $0x18] sm:$0xff]
        %v866 = vld [vmem:[%s861 + $0x20] sm:$0xff]
        %v867 = vld [vmem:[%s861 + $0x28] sm:$0xff]
        %v868 = vld [vmem:[%s861 + $0x30] sm:$0xff]
        %v869 = vld [vmem:[%s861 + $0x38] sm:$0xff]
        %v870 = vld [vmem:[%s861 + $0x40] sm:$0xff]
        %v871 = vld [vmem:[%s861 + $0x48] sm:$0xff]
        %v872 = vld [vmem:[%s861 + $0x50] sm:$0xff]
        %v873 = vld [vmem:[%s861 + $0x58] sm:$0xff]
        %v874 = vld [vmem:[%s861 + $0x60] sm:$0xff]
        %v875 = vld [vmem:[%s861 + $0x68] sm:$0xff]
        %v876 = vld [vmem:[%s861 + $0x70] sm:$0xff]
        %v877 = vld [vmem:[%s861 + $0x78] sm:$0xff]
        %v878 = vld [vmem:[%s861 + $0x80] sm:$0xff]
        %v879 = vld [vmem:[%s861 + $0x88] sm:$0xff]
        %v880 = vld [vmem:[%s861 + $0x90] sm:$0xff]
        %v881 = vld [vmem:[%s861 + $0x98] sm:$0xff]
        %v882 = vld [vmem:[%s861 + $0xa0] sm:$0xff]
        %v883 = vld [vmem:[%s861 + $0xa8] sm:$0xff]
        %v884 = vld [vmem:[%s861 + $0xb0] sm:$0xff]
        %v885 = vld [vmem:[%s861 + $0xb8] sm:$0xff]
        %v886 = vld [vmem:[%s861 + $0xc0] sm:$0x3f]
        %v887 = vld [vmem:[%s861 + $0xc8] sm:$0x3f]
        %v889 = vsel %vm343, %v886, 0
        %v892 = vsel %vm343, %v887, 0
        %894 = vmatprep.subr.mxu0 %v863
        %895 = vmatpush1.msra.mxu0 %v862
        %896 = vmatprep.subr.mxu0 %v865
        %897 = vmatpush1.msra.mxu0 %v864
        %898 = vmatprep.subr.mxu0 %v867
        %899 = vmatpush1.msra.mxu0 %v866
        %900 = vmatprep.subr.mxu0 %v869
        %901 = vmatpush1.msra.mxu0 %v868
        %902 = vmatprep.subr.mxu0 %v871
        %903 = vmatpush1.msra.mxu0 %v870
        %904 = vmatprep.subr.mxu0 %v873
        %905 = vmatpush1.msra.mxu0 %v872
        %906 = vmatprep.subr.mxu0 %v875
        %907 = vmatpush1.msra.mxu0 %v874
        %908 = vmatprep.subr.mxu0 %v877
        %909 = vmatpush1.msra.mxu0 %v876
        %910 = vmatprep.subr.mxu0 %v879
        %911 = vmatpush1.msra.mxu0 %v878
        %912 = vmatprep.subr.mxu0 %v881
        %913 = vmatpush1.msra.mxu0 %v880
        %914 = vmatprep.subr.mxu0 %v883
        %915 = vmatpush1.msra.mxu0 %v882
        %916 = vmatprep.subr.mxu0 %v885
        %917 = vmatpush1.msra.mxu0 %v884
        %918 = vmatprep.subr.mxu0 %v892
        %919 = vmatpush1.msra.mxu0 %v889
        %920 = vmatprep.subr.mxu0 0.0
        %921 = vmatpush1.msra.mxu0 0.0
        %922 = vmatprep.subr.mxu0 0.0
        %923 = vmatpush1.msra.mxu0 0.0
        %924 = vmatprep.subr.mxu0 0.0
        %925 = vmatpush1.msra.mxu0 0.0
        %926 = vmatprep.subr.mxu0 0.0
        %927 = vmatpush1.msra.mxu0 0.0
        %928 = vmatprep.subr.mxu0 0.0
        %929 = vmatpush1.msra.mxu0 0.0
        %930 = vmatprep.subr.mxu0 0.0
        %931 = vmatpush1.msra.mxu0 0.0
        %932 = vmatprep.subr.mxu0 0.0
        %933 = vmatpush1.msra.mxu0 0.0
        %934 = vmatprep.subr.mxu0 0.0
        %935 = vmatpush1.msra.mxu0 0.0
        %936 = vmatprep.subr.mxu0 0.0
        %937 = vmatpush1.msra.mxu0 0.0
        %938 = vmatprep.subr.mxu0 0.0
        %939 = vmatpush1.msra.mxu0 0.0
        %940 = vmatprep.subr.mxu0 0.0
        %941 = vmatpush1.msra.mxu0 0.0
        %942 = vmatprep.subr.mxu0 0.0
        %943 = vmatpush1.msra.mxu0 0.0
        %944 = vmatprep.subr.mxu0 0.0
        %945 = vmatpush1.msra.mxu0 0.0
        %946 = vmatprep.subr.mxu0 0.0
        %947 = vmatpush1.msra.mxu0 0.0
        %948 = vmatprep.subr.mxu0 0.0
        %949 = vmatpush1.msra.mxu0 0.0
        %950 = vmatprep.subr.mxu0 0.0
        %951 = vmatpush1.msra.mxu0 0.0
        %952 = vmatprep.subr.mxu0 0.0
        %953 = vmatpush1.msra.mxu0 0.0
        %954 = vmatprep.subr.mxu0 0.0
        %955 = vmatpush1.msra.mxu0 0.0
        %956 = vmatprep.subr.mxu0 0.0
        %957 = vmatpush1.msra.mxu0 0.0
        %958 = vmatprep.mubr.f32.mxu0 0.0
        %959 = vmatmul.mubr.f32.gmra.mrb[0].mxu0 %v550
        %v960 = vpop.f32.mrb[0].mxu0
        %v961 = vadd.f32 0.0, %v960
        %v962 = vpop.f32.mrb[0].mxu0
        %v963 = vadd.f32 0.0, %v962
        %964 = vmatprep.mubr.f32.mxu0 0.0
        %965 = vmatmul.mubr.f32.gmra.mrb[0].mxu0 %v552
        %v966 = vpop.f32.mrb[0].mxu0
        %v967 = vadd.f32 0.0, %v966
        %v968 = vpop.f32.mrb[0].mxu0
        %v969 = vadd.f32 0.0, %v968
        %970 = vdwg.mxu0
        %v971 = vadd.f32 %v851, %v961
        %v972 = vadd.f32 %v853, %v963
        %v973 = vadd.f32 %v857, %v967
        %v974 = vadd.f32 %v859, %v969
        %975 = vmatprep.subr.mxu0 %v311
        %976 = vmatpush1.msra.mxu0 %v310
        %977 = vmatprep.subr.mxu0 %v313
        %978 = vmatpush1.msra.mxu0 %v312
        %979 = vmatprep.subr.mxu0 %v315
        %980 = vmatpush1.msra.mxu0 %v314
        %981 = vmatprep.subr.mxu0 %v317
        %982 = vmatpush1.msra.mxu0 %v316
        %983 = vmatprep.subr.mxu0 %v319
        %984 = vmatpush1.msra.mxu0 %v318
        %985 = vmatprep.subr.mxu0 %v321
        %986 = vmatpush1.msra.mxu0 %v320
        %987 = vmatprep.subr.mxu0 %v323
        %988 = vmatpush1.msra.mxu0 %v322
        %989 = vmatprep.subr.mxu0 %v325
        %990 = vmatpush1.msra.mxu0 %v324
        %991 = vmatprep.subr.mxu0 %v327
        %992 = vmatpush1.msra.mxu0 %v326
        %993 = vmatprep.subr.mxu0 %v329
        %994 = vmatpush1.msra.mxu0 %v328
        %995 = vmatprep.subr.mxu0 %v331
        %996 = vmatpush1.msra.mxu0 %v330
        %997 = vmatprep.subr.mxu0 %v333
        %998 = vmatpush1.msra.mxu0 %v332
        %999 = vmatprep.subr.mxu0 %v348
        %1000 = vmatpush1.msra.mxu0 %v345
        %1001 = vmatprep.subr.mxu0 0.0
        %1002 = vmatpush1.msra.mxu0 0.0
        %1003 = vmatprep.subr.mxu0 0.0
        %1004 = vmatpush1.msra.mxu0 0.0
        %1005 = vmatprep.subr.mxu0 0.0
        %1006 = vmatpush1.msra.mxu0 0.0
        %1007 = vmatprep.subr.mxu0 0.0
        %1008 = vmatpush1.msra.mxu0 0.0
        %1009 = vmatprep.subr.mxu0 0.0
        %1010 = vmatpush1.msra.mxu0 0.0
        %1011 = vmatprep.subr.mxu0 0.0
        %1012 = vmatpush1.msra.mxu0 0.0
        %1013 = vmatprep.subr.mxu0 0.0
        %1014 = vmatpush1.msra.mxu0 0.0
        %1015 = vmatprep.subr.mxu0 0.0
        %1016 = vmatpush1.msra.mxu0 0.0
        %1017 = vmatprep.subr.mxu0 0.0
        %1018 = vmatpush1.msra.mxu0 0.0
        %1019 = vmatprep.subr.mxu0 0.0
        %1020 = vmatpush1.msra.mxu0 0.0
        %1021 = vmatprep.subr.mxu0 0.0
        %1022 = vmatpush1.msra.mxu0 0.0
        %1023 = vmatprep.subr.mxu0 0.0
        %1024 = vmatpush1.msra.mxu0 0.0
        %1025 = vmatprep.subr.mxu0 0.0
        %1026 = vmatpush1.msra.mxu0 0.0
        %1027 = vmatprep.subr.mxu0 0.0
        %1028 = vmatpush1.msra.mxu0 0.0
        %1029 = vmatprep.subr.mxu0 0.0
        %1030 = vmatpush1.msra.mxu0 0.0
        %1031 = vmatprep.subr.mxu0 0.0
        %1032 = vmatpush1.msra.mxu0 0.0
        %1033 = vmatprep.subr.mxu0 0.0
        %1034 = vmatpush1.msra.mxu0 0.0
        %1035 = vmatprep.subr.mxu0 0.0
        %1036 = vmatpush1.msra.mxu0 0.0
        %1037 = vmatprep.subr.mxu0 0.0
        %1038 = vmatpush1.msra.mxu0 0.0
        %1039 = vmatprep.mubr.f32.mxu0 0.0
        %1040 = vmatmul.mubr.f32.gmra.mrb[0].mxu0 %v550
        %v1041 = vpop.f32.mrb[0].mxu0
        %v1042 = vadd.f32 0.0, %v1041
        %v1043 = vpop.f32.mrb[0].mxu0
        %v1044 = vadd.f32 0.0, %v1043
        %1045 = vmatprep.mubr.f32.mxu0 0.0
        %1046 = vmatmul.mubr.f32.gmra.mrb[0].mxu0 %v552
        %v1047 = vpop.f32.mrb[0].mxu0
        %v1048 = vadd.f32 0.0, %v1047
        %v1049 = vpop.f32.mrb[0].mxu0
        %v1050 = vadd.f32 0.0, %v1049
        %1051 = vdwg.mxu0
        %1052 = vmatprep.subr.mxu0 %v284
        %1053 = vmatpush1.msra.mxu0 %v283
        %1054 = vmatprep.subr.mxu0 %v286
        %1055 = vmatpush1.msra.mxu0 %v285
        %1056 = vmatprep.subr.mxu0 %v288
        %1057 = vmatpush1.msra.mxu0 %v287
        %1058 = vmatprep.subr.mxu0 %v290
        %1059 = vmatpush1.msra.mxu0 %v289
        %1060 = vmatprep.subr.mxu0 %v292
        %1061 = vmatpush1.msra.mxu0 %v291
        %1062 = vmatprep.subr.mxu0 %v294
        %1063 = vmatpush1.msra.mxu0 %v293
        %1064 = vmatprep.subr.mxu0 %v296
        %1065 = vmatpush1.msra.mxu0 %v295
        %1066 = vmatprep.subr.mxu0 %v298
        %1067 = vmatpush1.msra.mxu0 %v297
        %1068 = vmatprep.subr.mxu0 %v300
        %1069 = vmatpush1.msra.mxu0 %v299
        %1070 = vmatprep.subr.mxu0 %v302
        %1071 = vmatpush1.msra.mxu0 %v301
        %1072 = vmatprep.subr.mxu0 %v304
        %1073 = vmatpush1.msra.mxu0 %v303
        %1074 = vmatprep.subr.mxu0 %v306
        %1075 = vmatpush1.msra.mxu0 %v305
        %1076 = vmatprep.subr.mxu0 %v437
        %1077 = vmatpush1.msra.mxu0 %v434
        %1078 = vmatprep.subr.mxu0 0.0
        %1079 = vmatpush1.msra.mxu0 0.0
        %1080 = vmatprep.subr.mxu0 0.0
        %1081 = vmatpush1.msra.mxu0 0.0
        %1082 = vmatprep.subr.mxu0 0.0
        %1083 = vmatpush1.msra.mxu0 0.0
        %1084 = vmatprep.subr.mxu0 0.0
        %1085 = vmatpush1.msra.mxu0 0.0
        %1086 = vmatprep.subr.mxu0 0.0
        %1087 = vmatpush1.msra.mxu0 0.0
        %1088 = vmatprep.subr.mxu0 0.0
        %1089 = vmatpush1.msra.mxu0 0.0
        %1090 = vmatprep.subr.mxu0 0.0
        %1091 = vmatpush1.msra.mxu0 0.0
        %1092 = vmatprep.subr.mxu0 0.0
        %1093 = vmatpush1.msra.mxu0 0.0
        %1094 = vmatprep.subr.mxu0 0.0
        %1095 = vmatpush1.msra.mxu0 0.0
        %1096 = vmatprep.subr.mxu0 0.0
        %1097 = vmatpush1.msra.mxu0 0.0
        %1098 = vmatprep.subr.mxu0 0.0
        %1099 = vmatpush1.msra.mxu0 0.0
        %1100 = vmatprep.subr.mxu0 0.0
        %1101 = vmatpush1.msra.mxu0 0.0
        %1102 = vmatprep.subr.mxu0 0.0
        %1103 = vmatpush1.msra.mxu0 0.0
        %1104 = vmatprep.subr.mxu0 0.0
        %1105 = vmatpush1.msra.mxu0 0.0
        %1106 = vmatprep.subr.mxu0 0.0
        %1107 = vmatpush1.msra.mxu0 0.0
        %1108 = vmatprep.subr.mxu0 0.0
        %1109 = vmatpush1.msra.mxu0 0.0
        %1110 = vmatprep.subr.mxu0 0.0
        %1111 = vmatpush1.msra.mxu0 0.0
        %1112 = vmatprep.subr.mxu0 0.0
        %1113 = vmatpush1.msra.mxu0 0.0
        %1114 = vmatprep.subr.mxu0 0.0
        %1115 = vmatpush1.msra.mxu0 0.0
        %1116 = vmatprep.mubr.f32.mxu0 0.0
        %1117 = vmatmul.mubr.f32.gmra.mrb[0].mxu0 %v338
        %v1118 = vpop.f32.mrb[0].mxu0
        %v1119 = vadd.f32 %v1042, %v1118
        %v1120 = vpop.f32.mrb[0].mxu0
        %v1121 = vadd.f32 %v1044, %v1120
        %1122 = vmatprep.mubr.f32.mxu0 0.0
        %1123 = vmatmul.mubr.f32.gmra.mrb[0].mxu0 %v341
        %v1124 = vpop.f32.mrb[0].mxu0
        %v1125 = vadd.f32 %v1048, %v1124
        %v1126 = vpop.f32.mrb[0].mxu0
        %v1127 = vadd.f32 %v1050, %v1126
        %1128 = vdwg.mxu0
        %v1130 = vrot.slane %v280, 1
        %v1131 = vrot.slane %v281, 1
        %v1132 = vsel %vm544, %v1130, %v1131
        %v1133 = vrot.slane %v282, 1
        %v1134 = vsel %vm544, %v1131, %v1133
        %v1135 = vsel %vm336, %v1132, 0
        %v1137 = vsel %vm336, %v1134, 0
        %1139 = vmatprep.subr.mxu0 %v518
        %1140 = vmatpush1.msra.mxu0 %v517
        %1141 = vmatprep.subr.mxu0 %v520
        %1142 = vmatpush1.msra.mxu0 %v519
        %1143 = vmatprep.subr.mxu0 %v522
        %1144 = vmatpush1.msra.mxu0 %v521
        %1145 = vmatprep.subr.mxu0 %v524
        %1146 = vmatpush1.msra.mxu0 %v523
        %1147 = vmatprep.subr.mxu0 %v526
        %1148 = vmatpush1.msra.mxu0 %v525
        %1149 = vmatprep.subr.mxu0 %v528
        %1150 = vmatpush1.msra.mxu0 %v527
        %1151 = vmatprep.subr.mxu0 %v530
        %1152 = vmatpush1.msra.mxu0 %v529
        %1153 = vmatprep.subr.mxu0 %v532
        %1154 = vmatpush1.msra.mxu0 %v531
        %1155 = vmatprep.subr.mxu0 %v534
        %1156 = vmatpush1.msra.mxu0 %v533
        %1157 = vmatprep.subr.mxu0 %v536
        %1158 = vmatpush1.msra.mxu0 %v535
        %1159 = vmatprep.subr.mxu0 %v538
        %1160 = vmatpush1.msra.mxu0 %v537
        %1161 = vmatprep.subr.mxu0 %v540
        %1162 = vmatpush1.msra.mxu0 %v539
        %1163 = vmatprep.subr.mxu0 %v558
        %1164 = vmatpush1.msra.mxu0 %v555
        %1165 = vmatprep.subr.mxu0 0.0
        %1166 = vmatpush1.msra.mxu0 0.0
        %1167 = vmatprep.subr.mxu0 0.0
        %1168 = vmatpush1.msra.mxu0 0.0
        %1169 = vmatprep.subr.mxu0 0.0
        %1170 = vmatpush1.msra.mxu0 0.0
        %1171 = vmatprep.subr.mxu0 0.0
        %1172 = vmatpush1.msra.mxu0 0.0
        %1173 = vmatprep.subr.mxu0 0.0
        %1174 = vmatpush1.msra.mxu0 0.0
        %1175 = vmatprep.subr.mxu0 0.0
        %1176 = vmatpush1.msra.mxu0 0.0
        %1177 = vmatprep.subr.mxu0 0.0
        %1178 = vmatpush1.msra.mxu0 0.0
        %1179 = vmatprep.subr.mxu0 0.0
        %1180 = vmatpush1.msra.mxu0 0.0
        %1181 = vmatprep.subr.mxu0 0.0
        %1182 = vmatpush1.msra.mxu0 0.0
        %1183 = vmatprep.subr.mxu0 0.0
        %1184 = vmatpush1.msra.mxu0 0.0
        %1185 = vmatprep.subr.mxu0 0.0
        %1186 = vmatpush1.msra.mxu0 0.0
        %1187 = vmatprep.subr.mxu0 0.0
        %1188 = vmatpush1.msra.mxu0 0.0
        %1189 = vmatprep.subr.mxu0 0.0
        %1190 = vmatpush1.msra.mxu0 0.0
        %1191 = vmatprep.subr.mxu0 0.0
        %1192 = vmatpush1.msra.mxu0 0.0
        %1193 = vmatprep.subr.mxu0 0.0
        %1194 = vmatpush1.msra.mxu0 0.0
        %1195 = vmatprep.subr.mxu0 0.0
        %1196 = vmatpush1.msra.mxu0 0.0
        %1197 = vmatprep.subr.mxu0 0.0
        %1198 = vmatpush1.msra.mxu0 0.0
        %1199 = vmatprep.subr.mxu0 0.0
        %1200 = vmatpush1.msra.mxu0 0.0
        %1201 = vmatprep.subr.mxu0 0.0
        %1202 = vmatpush1.msra.mxu0 0.0
        %1203 = vmatprep.mubr.f32.mxu0 0.0
        %1204 = vmatmul.mubr.f32.gmra.mrb[0].mxu0 %v1135
        %v1205 = vpop.f32.mrb[0].mxu0
        %v1206 = vadd.f32 0.0, %v1205
        %v1207 = vpop.f32.mrb[0].mxu0
        %v1208 = vadd.f32 0.0, %v1207
        %1209 = vmatprep.mubr.f32.mxu0 0.0
        %1210 = vmatmul.mubr.f32.gmra.mrb[0].mxu0 %v1137
        %v1211 = vpop.f32.mrb[0].mxu0
        %v1212 = vadd.f32 0.0, %v1211
        %v1213 = vpop.f32.mrb[0].mxu0
        %v1214 = vadd.f32 0.0, %v1213
        %1215 = vdwg.mxu0
        %v1216 = vadd.f32 %v1119, %v1206
        %v1217 = vadd.f32 %v1121, %v1208
        %v1218 = vadd.f32 %v1125, %v1212
        %v1219 = vadd.f32 %v1127, %v1214
        %1220 = vmatprep.subr.mxu0 %v670
        %1221 = vmatpush1.msra.mxu0 %v669
        %1222 = vmatprep.subr.mxu0 %v672
        %1223 = vmatpush1.msra.mxu0 %v671
        %1224 = vmatprep.subr.mxu0 %v674
        %1225 = vmatpush1.msra.mxu0 %v673
        %1226 = vmatprep.subr.mxu0 %v676
        %1227 = vmatpush1.msra.mxu0 %v675
        %1228 = vmatprep.subr.mxu0 %v678
        %1229 = vmatpush1.msra.mxu0 %v677
        %1230 = vmatprep.subr.mxu0 %v680
        %1231 = vmatpush1.msra.mxu0 %v679
        %1232 = vmatprep.subr.mxu0 %v682
        %1233 = vmatpush1.msra.mxu0 %v681
        %1234 = vmatprep.subr.mxu0 %v684
        %1235 = vmatpush1.msra.mxu0 %v683
        %1236 = vmatprep.subr.mxu0 %v686
        %1237 = vmatpush1.msra.mxu0 %v685
        %1238 = vmatprep.subr.mxu0 %v688
        %1239 = vmatpush1.msra.mxu0 %v687
        %1240 = vmatprep.subr.mxu0 %v690
        %1241 = vmatpush1.msra.mxu0 %v689
        %1242 = vmatprep.subr.mxu0 %v692
        %1243 = vmatpush1.msra.mxu0 %v691
        %1244 = vmatprep.subr.mxu0 %v699
        %1245 = vmatpush1.msra.mxu0 %v696
        %1246 = vmatprep.subr.mxu0 0.0
        %1247 = vmatpush1.msra.mxu0 0.0
        %1248 = vmatprep.subr.mxu0 0.0
        %1249 = vmatpush1.msra.mxu0 0.0
        %1250 = vmatprep.subr.mxu0 0.0
        %1251 = vmatpush1.msra.mxu0 0.0
        %1252 = vmatprep.subr.mxu0 0.0
        %1253 = vmatpush1.msra.mxu0 0.0
        %1254 = vmatprep.subr.mxu0 0.0
        %1255 = vmatpush1.msra.mxu0 0.0
        %1256 = vmatprep.subr.mxu0 0.0
        %1257 = vmatpush1.msra.mxu0 0.0
        %1258 = vmatprep.subr.mxu0 0.0
        %1259 = vmatpush1.msra.mxu0 0.0
        %1260 = vmatprep.subr.mxu0 0.0
        %1261 = vmatpush1.msra.mxu0 0.0
        %1262 = vmatprep.subr.mxu0 0.0
        %1263 = vmatpush1.msra.mxu0 0.0
        %1264 = vmatprep.subr.mxu0 0.0
        %1265 = vmatpush1.msra.mxu0 0.0
        %1266 = vmatprep.subr.mxu0 0.0
        %1267 = vmatpush1.msra.mxu0 0.0
        %1268 = vmatprep.subr.mxu0 0.0
        %1269 = vmatpush1.msra.mxu0 0.0
        %1270 = vmatprep.subr.mxu0 0.0
        %1271 = vmatpush1.msra.mxu0 0.0
        %1272 = vmatprep.subr.mxu0 0.0
        %1273 = vmatpush1.msra.mxu0 0.0
        %1274 = vmatprep.subr.mxu0 0.0
        %1275 = vmatpush1.msra.mxu0 0.0
        %1276 = vmatprep.subr.mxu0 0.0
        %1277 = vmatpush1.msra.mxu0 0.0
        %1278 = vmatprep.subr.mxu0 0.0
        %1279 = vmatpush1.msra.mxu0 0.0
        %1280 = vmatprep.subr.mxu0 0.0
        %1281 = vmatpush1.msra.mxu0 0.0
        %1282 = vmatprep.subr.mxu0 0.0
        %1283 = vmatpush1.msra.mxu0 0.0
        %1284 = vmatprep.mubr.f32.mxu0 0.0
        %1285 = vmatmul.mubr.f32.gmra.mrb[0].mxu0 %v550
        %v1286 = vpop.f32.mrb[0].mxu0
        %v1287 = vadd.f32 0.0, %v1286
        %v1288 = vpop.f32.mrb[0].mxu0
        %v1289 = vadd.f32 0.0, %v1288
        %1290 = vmatprep.mubr.f32.mxu0 0.0
        %1291 = vmatmul.mubr.f32.gmra.mrb[0].mxu0 %v552
        %v1292 = vpop.f32.mrb[0].mxu0
        %v1293 = vadd.f32 0.0, %v1292
        %v1294 = vpop.f32.mrb[0].mxu0
        %v1295 = vadd.f32 0.0, %v1294
        %1296 = vdwg.mxu0
        %1297 = vmatprep.subr.mxu0 %v643
        %1298 = vmatpush1.msra.mxu0 %v642
        %1299 = vmatprep.subr.mxu0 %v645
        %1300 = vmatpush1.msra.mxu0 %v644
        %1301 = vmatprep.subr.mxu0 %v647
        %1302 = vmatpush1.msra.mxu0 %v646
        %1303 = vmatprep.subr.mxu0 %v649
        %1304 = vmatpush1.msra.mxu0 %v648
        %1305 = vmatprep.subr.mxu0 %v651
        %1306 = vmatpush1.msra.mxu0 %v650
        %1307 = vmatprep.subr.mxu0 %v653
        %1308 = vmatpush1.msra.mxu0 %v652
        %1309 = vmatprep.subr.mxu0 %v655
        %1310 = vmatpush1.msra.mxu0 %v654
        %1311 = vmatprep.subr.mxu0 %v657
        %1312 = vmatpush1.msra.mxu0 %v656
        %1313 = vmatprep.subr.mxu0 %v659
        %1314 = vmatpush1.msra.mxu0 %v658
        %1315 = vmatprep.subr.mxu0 %v661
        %1316 = vmatpush1.msra.mxu0 %v660
        %1317 = vmatprep.subr.mxu0 %v663
        %1318 = vmatpush1.msra.mxu0 %v662
        %1319 = vmatprep.subr.mxu0 %v665
        %1320 = vmatpush1.msra.mxu0 %v664
        %1321 = vmatprep.subr.mxu0 %v782
        %1322 = vmatpush1.msra.mxu0 %v779
        %1323 = vmatprep.subr.mxu0 0.0
        %1324 = vmatpush1.msra.mxu0 0.0
        %1325 = vmatprep.subr.mxu0 0.0
        %1326 = vmatpush1.msra.mxu0 0.0
        %1327 = vmatprep.subr.mxu0 0.0
        %1328 = vmatpush1.msra.mxu0 0.0
        %1329 = vmatprep.subr.mxu0 0.0
        %1330 = vmatpush1.msra.mxu0 0.0
        %1331 = vmatprep.subr.mxu0 0.0
        %1332 = vmatpush1.msra.mxu0 0.0
        %1333 = vmatprep.subr.mxu0 0.0
        %1334 = vmatpush1.msra.mxu0 0.0
        %1335 = vmatprep.subr.mxu0 0.0
        %1336 = vmatpush1.msra.mxu0 0.0
        %1337 = vmatprep.subr.mxu0 0.0
        %1338 = vmatpush1.msra.mxu0 0.0
        %1339 = vmatprep.subr.mxu0 0.0
        %1340 = vmatpush1.msra.mxu0 0.0
        %1341 = vmatprep.subr.mxu0 0.0
        %1342 = vmatpush1.msra.mxu0 0.0
        %1343 = vmatprep.subr.mxu0 0.0
        %1344 = vmatpush1.msra.mxu0 0.0
        %1345 = vmatprep.subr.mxu0 0.0
        %1346 = vmatpush1.msra.mxu0 0.0
        %1347 = vmatprep.subr.mxu0 0.0
        %1348 = vmatpush1.msra.mxu0 0.0
        %1349 = vmatprep.subr.mxu0 0.0
        %1350 = vmatpush1.msra.mxu0 0.0
        %1351 = vmatprep.subr.mxu0 0.0
        %1352 = vmatpush1.msra.mxu0 0.0
        %1353 = vmatprep.subr.mxu0 0.0
        %1354 = vmatpush1.msra.mxu0 0.0
        %1355 = vmatprep.subr.mxu0 0.0
        %1356 = vmatpush1.msra.mxu0 0.0
        %1357 = vmatprep.subr.mxu0 0.0
        %1358 = vmatpush1.msra.mxu0 0.0
        %1359 = vmatprep.subr.mxu0 0.0
        %1360 = vmatpush1.msra.mxu0 0.0
        %1361 = vmatprep.mubr.f32.mxu0 0.0
        %1362 = vmatmul.mubr.f32.gmra.mrb[0].mxu0 %v338
        %v1363 = vpop.f32.mrb[0].mxu0
        %v1364 = vadd.f32 %v1287, %v1363
        %v1365 = vpop.f32.mrb[0].mxu0
        %v1366 = vadd.f32 %v1289, %v1365
        %1367 = vmatprep.mubr.f32.mxu0 0.0
        %1368 = vmatmul.mubr.f32.gmra.mrb[0].mxu0 %v341
        %v1369 = vpop.f32.mrb[0].mxu0
        %v1370 = vadd.f32 %v1293, %v1369
        %v1371 = vpop.f32.mrb[0].mxu0
        %v1372 = vadd.f32 %v1295, %v1371
        %1373 = vdwg.mxu0
        %1374 = vmatprep.subr.mxu0 %v863
        %1375 = vmatpush1.msra.mxu0 %v862
        %1376 = vmatprep.subr.mxu0 %v865
        %1377 = vmatpush1.msra.mxu0 %v864
        %1378 = vmatprep.subr.mxu0 %v867
        %1379 = vmatpush1.msra.mxu0 %v866
        %1380 = vmatprep.subr.mxu0 %v869
        %1381 = vmatpush1.msra.mxu0 %v868
        %1382 = vmatprep.subr.mxu0 %v871
        %1383 = vmatpush1.msra.mxu0 %v870
        %1384 = vmatprep.subr.mxu0 %v873
        %1385 = vmatpush1.msra.mxu0 %v872
        %1386 = vmatprep.subr.mxu0 %v875
        %1387 = vmatpush1.msra.mxu0 %v874
        %1388 = vmatprep.subr.mxu0 %v877
        %1389 = vmatpush1.msra.mxu0 %v876
        %1390 = vmatprep.subr.mxu0 %v879
        %1391 = vmatpush1.msra.mxu0 %v878
        %1392 = vmatprep.subr.mxu0 %v881
        %1393 = vmatpush1.msra.mxu0 %v880
        %1394 = vmatprep.subr.mxu0 %v883
        %1395 = vmatpush1.msra.mxu0 %v882
        %1396 = vmatprep.subr.mxu0 %v885
        %1397 = vmatpush1.msra.mxu0 %v884
        %1398 = vmatprep.subr.mxu0 %v892
        %1399 = vmatpush1.msra.mxu0 %v889
        %1400 = vmatprep.subr.mxu0 0.0
        %1401 = vmatpush1.msra.mxu0 0.0
        %1402 = vmatprep.subr.mxu0 0.0
        %1403 = vmatpush1.msra.mxu0 0.0
        %1404 = vmatprep.subr.mxu0 0.0
        %1405 = vmatpush1.msra.mxu0 0.0
        %1406 = vmatprep.subr.mxu0 0.0
        %1407 = vmatpush1.msra.mxu0 0.0
        %1408 = vmatprep.subr.mxu0 0.0
        %1409 = vmatpush1.msra.mxu0 0.0
        %1410 = vmatprep.subr.mxu0 0.0
        %1411 = vmatpush1.msra.mxu0 0.0
        %1412 = vmatprep.subr.mxu0 0.0
        %1413 = vmatpush1.msra.mxu0 0.0
        %1414 = vmatprep.subr.mxu0 0.0
        %1415 = vmatpush1.msra.mxu0 0.0
        %1416 = vmatprep.subr.mxu0 0.0
        %1417 = vmatpush1.msra.mxu0 0.0
        %1418 = vmatprep.subr.mxu0 0.0
        %1419 = vmatpush1.msra.mxu0 0.0
        %1420 = vmatprep.subr.mxu0 0.0
        %1421 = vmatpush1.msra.mxu0 0.0
        %1422 = vmatprep.subr.mxu0 0.0
        %1423 = vmatpush1.msra.mxu0 0.0
        %1424 = vmatprep.subr.mxu0 0.0
        %1425 = vmatpush1.msra.mxu0 0.0
        %1426 = vmatprep.subr.mxu0 0.0
        %1427 = vmatpush1.msra.mxu0 0.0
        %1428 = vmatprep.subr.mxu0 0.0
        %1429 = vmatpush1.msra.mxu0 0.0
        %1430 = vmatprep.subr.mxu0 0.0
        %1431 = vmatpush1.msra.mxu0 0.0
        %1432 = vmatprep.subr.mxu0 0.0
        %1433 = vmatpush1.msra.mxu0 0.0
        %1434 = vmatprep.subr.mxu0 0.0
        %1435 = vmatpush1.msra.mxu0 0.0
        %1436 = vmatprep.subr.mxu0 0.0
        %1437 = vmatpush1.msra.mxu0 0.0
        %1438 = vmatprep.mubr.f32.mxu0 0.0
        %1439 = vmatmul.mubr.f32.gmra.mrb[0].mxu0 %v1135
        %v1440 = vpop.f32.mrb[0].mxu0
        %v1441 = vadd.f32 0.0, %v1440
        %v1442 = vpop.f32.mrb[0].mxu0
        %v1443 = vadd.f32 0.0, %v1442
        %1444 = vmatprep.mubr.f32.mxu0 0.0
        %1445 = vmatmul.mubr.f32.gmra.mrb[0].mxu0 %v1137
        %v1446 = vpop.f32.mrb[0].mxu0
        %v1447 = vadd.f32 0.0, %v1446
        %v1448 = vpop.f32.mrb[0].mxu0
        %v1449 = vadd.f32 0.0, %v1448
        %1450 = vdwg.mxu0
        %v1451 = vadd.f32 %v1364, %v1441
        %v1452 = vadd.f32 %v1366, %v1443
        %v1453 = vadd.f32 %v1370, %v1447
        %v1454 = vadd.f32 %v1372, %v1449
        %v1455 = vmax.f32 %v637, %v971
        %v1456 = vmax.f32 %v638, %v972
        %v1457 = vmax.f32 %v639, %v973
        %v1458 = vmax.f32 %v640, %v974
        %v1459 = vmax.f32 %v1216, %v1451
        %v1460 = vmax.f32 %v1217, %v1452
        %v1461 = vmax.f32 %v1218, %v1453
        %v1462 = vmax.f32 %v1219, %v1454
        %v1463 = vmax.f32 %v1455, %v1459
        %v1464 = vmax.f32 %v1456, %v1460
        %v1465 = vmax.f32 %v1457, %v1461
        %v1466 = vmax.f32 %v1458, %v1462
        %v1467 = vld [vmem:[%s2] sm:$0x3]
        %v1469 = vlaneseq
        %v1470 = vshrl.u32 %v1469, 7
        %v1471 = vsub.s32 0, %v1470
        %v1472 = vrot.slane %v1467, %v1471
        %v1473 = vlaneseq
        %v1474 = vshrl.u32 %v1473, 7
        %v1475 = vsub.s32 1, %v1474
        %v1476 = vrot.slane %v1467, %v1475
        %v1479 = vadd.f32 %v1463, %v1472
        %v1480 = vadd.f32 %v1464, %v1476
        %v1481 = vadd.f32 %v1465, %v1472
        %v1482 = vadd.f32 %v1466, %v1476
        %v1483 = vmax.f32 %v1479, 0.0
        %v1484 = vmax.f32 %v1480, 0.0
        %v1485 = vmax.f32 %v1481, 0.0
        %v1486 = vmax.f32 %v1482, 0.0
        %v1487 = vlaneseq
        %vm1488 = vcmp.ge.s32.totalorder %v1487, 0
        %vm1489 = vcmp.lt.s32.totalorder %v1487, 192
        %vm1490 = vmand %vm1488, %vm1489
        %1491 = vst.msk [vmem:[#allocation2] ss:$8 sm:$0x3] %vm1490, 0.0
        %1492 = vst.msk [vmem:[#allocation2] ss:$8 sm:$0x0] %vm1490, 0.0
        %s1493 = scalar_lea.vmem [#allocation2], 33
        %1494 = vst.msk [vmem:[%s1493] ss:$8 sm:$0x3] %vm1490, 0.0
        %1495 = vst.msk [vmem:[%s1493] ss:$8 sm:$0x0] %vm1490, 0.0
        %vm1500 = vcmask 1040384
        %v1501 = vrot.slane %v1483, 7
        %v1502 = vrot.slane %v1484, 7
        %v1503 = vrot.slane %v1485, 7
        %v1504 = vsel %vm1500, %v1501, %v1503
        %v1505 = vrot.slane %v1486, 7
        %v1506 = vsel %vm1500, %v1502, %v1505
        %1513 = vst [vmem:[#allocation2] sm:$0xfe] %v1501
        %vm1514 = vcmask 523265
        %1515 = vst.msk [vmem:[#allocation2 + $0x8] sm:$0xfe] %vm1514, %v1502
        %1516 = vst [vmem:[#allocation2 + $0x10] sm:$0xff] %v1504
        %vm1517 = vcmask 523264
        %1518 = vst.msk [vmem:[#allocation2 + $0x18] sm:$0xff] %vm1517, %v1506
        %1519 = vst [vmem:[#allocation2 + $0x20] sm:$0x1] %v1503
        %vm1520 = vcmask 516096
        %1521 = vst.msk [vmem:[#allocation2 + $0x28] sm:$0x1] %vm1520, %v1505
        %v1522 = vld [vmem:[#allocation2] sm:$0xff]
        %v1523 = vld [vmem:[#allocation2 + $0x8] sm:$0xff]
        %v1524 = vld [vmem:[#allocation2 + $0x10] sm:$0xff]
        %v1525 = vld [vmem:[#allocation2 + $0x18] sm:$0xff]
        %v1526 = vld [vmem:[%s3] sm:$0xff]
        %v1527 = vld [vmem:[%s3 + $0x8] sm:$0xff]
        %v1528 = vld [vmem:[%s3 + $0x10] sm:$0xff]
        %v1529 = vld [vmem:[%s3 + $0x18] sm:$0xff]
        %v1530 = vld [vmem:[%s3 + $0x20] sm:$0xff]
        %v1531 = vld [vmem:[%s3 + $0x28] sm:$0xff]
        %v1532 = vld [vmem:[%s3 + $0x30] sm:$0xff]
        %v1533 = vld [vmem:[%s3 + $0x38] sm:$0xff]
        %v1534 = vld [vmem:[%s3 + $0x40] sm:$0xff]
        %v1535 = vld [vmem:[%s3 + $0x48] sm:$0xff]
        %v1536 = vld [vmem:[%s3 + $0x50] sm:$0xff]
        %v1537 = vld [vmem:[%s3 + $0x58] sm:$0xff]
        %v1538 = vld [vmem:[%s3 + $0x60] sm:$0xff]
        %v1539 = vld [vmem:[%s3 + $0x68] sm:$0xff]
        %v1540 = vld [vmem:[%s3 + $0x70] sm:$0xff]
        %v1541 = vld [vmem:[%s3 + $0x78] sm:$0xff]
        %v1542 = vld [vmem:[%s3 + $0x80] sm:$0xff]
        %v1543 = vld [vmem:[%s3 + $0x88] sm:$0xff]
        %v1544 = vld [vmem:[%s3 + $0x90] sm:$0xff]
        %v1545 = vld [vmem:[%s3 + $0x98] sm:$0xff]
        %v1546 = vld [vmem:[%s3 + $0xa0] sm:$0xff]
        %v1547 = vld [vmem:[%s3 + $0xa8] sm:$0xff]
        %v1548 = vld [vmem:[%s3 + $0xb0] sm:$0xff]
        %v1549 = vld [vmem:[%s3 + $0xb8] sm:$0xff]
        %v1550 = vld [vmem:[%s3 + $0xc0] sm:$0xff]
        %v1551 = vld [vmem:[%s3 + $0xc8] sm:$0xff]
        %v1552 = vld [vmem:[%s3 + $0xd0] sm:$0xff]
        %v1553 = vld [vmem:[%s3 + $0xd8] sm:$0xff]
        %v1554 = vld [vmem:[%s3 + $0xe0] sm:$0xff]
        %v1555 = vld [vmem:[%s3 + $0xe8] sm:$0xff]
        %v1556 = vld [vmem:[%s3 + $0xf0] sm:$0xff]
        %v1557 = vld [vmem:[%s3 + $0xf8] sm:$0xff]
        %v1558 = vld [vmem:[%s3 + $0x100] sm:$0xff]
        %v1559 = vld [vmem:[%s3 + $0x108] sm:$0xff]
        %v1560 = vld [vmem:[%s3 + $0x110] sm:$0xff]
        %v1561 = vld [vmem:[%s3 + $0x118] sm:$0xff]
        %v1562 = vld [vmem:[%s3 + $0x120] sm:$0xff]
        %v1563 = vld [vmem:[%s3 + $0x128] sm:$0xff]
        %v1564 = vld [vmem:[%s3 + $0x130] sm:$0xff]
        %v1565 = vld [vmem:[%s3 + $0x138] sm:$0xff]
        %v1566 = vld [vmem:[%s3 + $0x140] sm:$0xff]
        %v1567 = vld [vmem:[%s3 + $0x148] sm:$0xff]
        %v1568 = vld [vmem:[%s3 + $0x150] sm:$0xff]
        %v1569 = vld [vmem:[%s3 + $0x158] sm:$0xff]
        %v1570 = vld [vmem:[%s3 + $0x160] sm:$0xff]
        %v1571 = vld [vmem:[%s3 + $0x168] sm:$0xff]
        %v1572 = vld [vmem:[%s3 + $0x170] sm:$0xff]
        %v1573 = vld [vmem:[%s3 + $0x178] sm:$0xff]
        %v1574 = vld [vmem:[%s3 + $0x180] sm:$0xff]
        %v1575 = vld [vmem:[%s3 + $0x188] sm:$0xff]
        %v1576 = vld [vmem:[%s3 + $0x190] sm:$0xff]
        %v1577 = vld [vmem:[%s3 + $0x198] sm:$0xff]
        %v1578 = vld [vmem:[%s3 + $0x1a0] sm:$0xff]
        %v1579 = vld [vmem:[%s3 + $0x1a8] sm:$0xff]
        %v1580 = vld [vmem:[%s3 + $0x1b0] sm:$0xff]
        %v1581 = vld [vmem:[%s3 + $0x1b8] sm:$0xff]
        %v1582 = vld [vmem:[%s3 + $0x1c0] sm:$0xff]
        %v1583 = vld [vmem:[%s3 + $0x1c8] sm:$0xff]
        %v1584 = vld [vmem:[%s3 + $0x1d0] sm:$0xff]
        %v1585 = vld [vmem:[%s3 + $0x1d8] sm:$0xff]
        %v1586 = vld [vmem:[%s3 + $0x1e0] sm:$0xff]
        %v1587 = vld [vmem:[%s3 + $0x1e8] sm:$0xff]
        %v1588 = vld [vmem:[%s3 + $0x1f0] sm:$0xff]
        %v1589 = vld [vmem:[%s3 + $0x1f8] sm:$0xff]
        %v1590 = vld [vmem:[%s3 + $0x200] sm:$0xff]
        %v1591 = vld [vmem:[%s3 + $0x208] sm:$0xff]
        %v1592 = vld [vmem:[%s3 + $0x210] sm:$0xff]
        %v1593 = vld [vmem:[%s3 + $0x218] sm:$0xff]
        %v1594 = vld [vmem:[%s3 + $0x220] sm:$0xff]
        %v1595 = vld [vmem:[%s3 + $0x228] sm:$0xff]
        %v1596 = vld [vmem:[%s3 + $0x230] sm:$0xff]
        %v1597 = vld [vmem:[%s3 + $0x238] sm:$0xff]
        %v1598 = vld [vmem:[%s3 + $0x240] sm:$0xff]
        %v1599 = vld [vmem:[%s3 + $0x248] sm:$0xff]
        %v1600 = vld [vmem:[%s3 + $0x250] sm:$0xff]
        %v1601 = vld [vmem:[%s3 + $0x258] sm:$0xff]
        %v1602 = vld [vmem:[%s3 + $0x260] sm:$0xff]
        %v1603 = vld [vmem:[%s3 + $0x268] sm:$0xff]
        %v1604 = vld [vmem:[%s3 + $0x270] sm:$0xff]
        %v1605 = vld [vmem:[%s3 + $0x278] sm:$0xff]
        %v1606 = vld [vmem:[%s3 + $0x280] sm:$0xff]
        %v1607 = vld [vmem:[%s3 + $0x288] sm:$0xff]
        %v1608 = vld [vmem:[%s3 + $0x290] sm:$0xff]
        %v1609 = vld [vmem:[%s3 + $0x298] sm:$0xff]
        %v1610 = vld [vmem:[%s3 + $0x2a0] sm:$0xff]
        %v1611 = vld [vmem:[%s3 + $0x2a8] sm:$0xff]
        %v1612 = vld [vmem:[%s3 + $0x2b0] sm:$0xff]
        %v1613 = vld [vmem:[%s3 + $0x2b8] sm:$0xff]
        %v1614 = vld [vmem:[%s3 + $0x2c0] sm:$0xff]
        %v1615 = vld [vmem:[%s3 + $0x2c8] sm:$0xff]
        %v1616 = vld [vmem:[%s3 + $0x2d0] sm:$0xff]
        %v1617 = vld [vmem:[%s3 + $0x2d8] sm:$0xff]
        %v1618 = vld [vmem:[%s3 + $0x2e0] sm:$0xff]
        %v1619 = vld [vmem:[%s3 + $0x2e8] sm:$0xff]
        %v1620 = vld [vmem:[%s3 + $0x2f0] sm:$0xff]
        %v1621 = vld [vmem:[%s3 + $0x2f8] sm:$0xff]
        %v1622 = vld [vmem:[#allocation2] sm:$0xfe]
        %v1623 = vld [vmem:[#allocation2 + $0x8] sm:$0xfe]
        %v1624 = vld [vmem:[#allocation2 + $0x20] sm:$0x1]
        %v1625 = vld [vmem:[#allocation2 + $0x28] sm:$0x1]
        %s1626 = scalar_lea.vmem %s3, 768
        %v1627 = vld [vmem:[%s1626] sm:$0xff]
        %v1628 = vld [vmem:[%s1626 + $0x8] sm:$0xff]
        %v1629 = vld [vmem:[%s1626 + $0x10] sm:$0xff]
        %v1630 = vld [vmem:[%s1626 + $0x18] sm:$0xff]
        %v1631 = vld [vmem:[%s1626 + $0x20] sm:$0xff]
        %v1632 = vld [vmem:[%s1626 + $0x28] sm:$0xff]
        %v1633 = vld [vmem:[%s1626 + $0x30] sm:$0xff]
        %v1634 = vld [vmem:[%s1626 + $0x38] sm:$0xff]
        %v1635 = vld [vmem:[%s1626 + $0x40] sm:$0xff]
        %v1636 = vld [vmem:[%s1626 + $0x48] sm:$0xff]
        %v1637 = vld [vmem:[%s1626 + $0x50] sm:$0xff]
        %v1638 = vld [vmem:[%s1626 + $0x58] sm:$0xff]
        %v1639 = vld [vmem:[%s1626 + $0x60] sm:$0xff]
        %v1640 = vld [vmem:[%s1626 + $0x68] sm:$0xff]
        %v1641 = vld [vmem:[%s1626 + $0x70] sm:$0xff]
        %v1642 = vld [vmem:[%s1626 + $0x78] sm:$0xff]
        %v1643 = vld [vmem:[%s1626 + $0x80] sm:$0xff]
        %v1644 = vld [vmem:[%s1626 + $0x88] sm:$0xff]
        %v1645 = vld [vmem:[%s1626 + $0x90] sm:$0xff]
        %v1646 = vld [vmem:[%s1626 + $0x98] sm:$0xff]
        %v1647 = vld [vmem:[%s1626 + $0xa0] sm:$0xff]
        %v1648 = vld [vmem:[%s1626 + $0xa8] sm:$0xff]
        %v1649 = vld [vmem:[%s1626 + $0xb0] sm:$0xff]
        %v1650 = vld [vmem:[%s1626 + $0xb8] sm:$0xff]
        %v1651 = vld [vmem:[%s1626 + $0xc0] sm:$0xff]
        %v1652 = vld [vmem:[%s1626 + $0xc8] sm:$0xff]
        %v1653 = vld [vmem:[%s1626 + $0xd0] sm:$0xff]
        %v1654 = vld [vmem:[%s1626 + $0xd8] sm:$0xff]
        %v1655 = vld [vmem:[%s1626 + $0xe0] sm:$0xff]
        %v1656 = vld [vmem:[%s1626 + $0xe8] sm:$0xff]
        %v1657 = vld [vmem:[%s1626 + $0xf0] sm:$0xff]
        %v1658 = vld [vmem:[%s1626 + $0xf8] sm:$0xff]
        %v1659 = vld [vmem:[%s1626 + $0x100] sm:$0xff]
        %v1660 = vld [vmem:[%s1626 + $0x108] sm:$0xff]
        %v1661 = vld [vmem:[%s1626 + $0x110] sm:$0xff]
        %v1662 = vld [vmem:[%s1626 + $0x118] sm:$0xff]
        %v1663 = vld [vmem:[%s1626 + $0x120] sm:$0xff]
        %v1664 = vld [vmem:[%s1626 + $0x128] sm:$0xff]
        %v1665 = vld [vmem:[%s1626 + $0x130] sm:$0xff]
        %v1666 = vld [vmem:[%s1626 + $0x138] sm:$0xff]
        %v1667 = vld [vmem:[%s1626 + $0x140] sm:$0xff]
        %v1668 = vld [vmem:[%s1626 + $0x148] sm:$0xff]
        %v1669 = vld [vmem:[%s1626 + $0x150] sm:$0xff]
        %v1670 = vld [vmem:[%s1626 + $0x158] sm:$0xff]
        %v1671 = vld [vmem:[%s1626 + $0x160] sm:$0xff]
        %v1672 = vld [vmem:[%s1626 + $0x168] sm:$0xff]
        %v1673 = vld [vmem:[%s1626 + $0x170] sm:$0xff]
        %v1674 = vld [vmem:[%s1626 + $0x178] sm:$0xff]
        %v1675 = vld [vmem:[%s1626 + $0x180] sm:$0xff]
        %v1676 = vld [vmem:[%s1626 + $0x188] sm:$0xff]
        %v1677 = vld [vmem:[%s1626 + $0x190] sm:$0xff]
        %v1678 = vld [vmem:[%s1626 + $0x198] sm:$0xff]
        %v1679 = vld [vmem:[%s1626 + $0x1a0] sm:$0xff]
        %v1680 = vld [vmem:[%s1626 + $0x1a8] sm:$0xff]
        %v1681 = vld [vmem:[%s1626 + $0x1b0] sm:$0xff]
        %v1682 = vld [vmem:[%s1626 + $0x1b8] sm:$0xff]
        %v1683 = vld [vmem:[%s1626 + $0x1c0] sm:$0xff]
        %v1684 = vld [vmem:[%s1626 + $0x1c8] sm:$0xff]
        %v1685 = vld [vmem:[%s1626 + $0x1d0] sm:$0xff]
        %v1686 = vld [vmem:[%s1626 + $0x1d8] sm:$0xff]
        %v1687 = vld [vmem:[%s1626 + $0x1e0] sm:$0xff]
        %v1688 = vld [vmem:[%s1626 + $0x1e8] sm:$0xff]
        %v1689 = vld [vmem:[%s1626 + $0x1f0] sm:$0xff]
        %v1690 = vld [vmem:[%s1626 + $0x1f8] sm:$0xff]
        %v1691 = vld [vmem:[%s1626 + $0x200] sm:$0xff]
        %v1692 = vld [vmem:[%s1626 + $0x208] sm:$0xff]
        %v1693 = vld [vmem:[%s1626 + $0x210] sm:$0xff]
        %v1694 = vld [vmem:[%s1626 + $0x218] sm:$0xff]
        %v1695 = vld [vmem:[%s1626 + $0x220] sm:$0xff]
        %v1696 = vld [vmem:[%s1626 + $0x228] sm:$0xff]
        %v1697 = vld [vmem:[%s1626 + $0x230] sm:$0xff]
        %v1698 = vld [vmem:[%s1626 + $0x238] sm:$0xff]
        %v1699 = vld [vmem:[%s1626 + $0x240] sm:$0xff]
        %v1700 = vld [vmem:[%s1626 + $0x248] sm:$0xff]
        %v1701 = vld [vmem:[%s1626 + $0x250] sm:$0xff]
        %v1702 = vld [vmem:[%s1626 + $0x258] sm:$0xff]
        %v1703 = vld [vmem:[%s1626 + $0x260] sm:$0xff]
        %v1704 = vld [vmem:[%s1626 + $0x268] sm:$0xff]
        %v1705 = vld [vmem:[%s1626 + $0x270] sm:$0xff]
        %v1706 = vld [vmem:[%s1626 + $0x278] sm:$0xff]
        %v1707 = vld [vmem:[%s1626 + $0x280] sm:$0xff]
        %v1708 = vld [vmem:[%s1626 + $0x288] sm:$0xff]
        %v1709 = vld [vmem:[%s1626 + $0x290] sm:$0xff]
        %v1710 = vld [vmem:[%s1626 + $0x298] sm:$0xff]
        %v1711 = vld [vmem:[%s1626 + $0x2a0] sm:$0xff]
        %v1712 = vld [vmem:[%s1626 + $0x2a8] sm:$0xff]
        %v1713 = vld [vmem:[%s1626 + $0x2b0] sm:$0xff]
        %v1714 = vld [vmem:[%s1626 + $0x2b8] sm:$0xff]
        %v1715 = vld [vmem:[%s1626 + $0x2c0] sm:$0xff]
        %v1716 = vld [vmem:[%s1626 + $0x2c8] sm:$0xff]
        %v1717 = vld [vmem:[%s1626 + $0x2d0] sm:$0xff]
        %v1718 = vld [vmem:[%s1626 + $0x2d8] sm:$0xff]
        %v1719 = vld [vmem:[%s1626 + $0x2e0] sm:$0xff]
        %v1720 = vld [vmem:[%s1626 + $0x2e8] sm:$0xff]
        %v1721 = vld [vmem:[%s1626 + $0x2f0] sm:$0xff]
        %v1722 = vld [vmem:[%s1626 + $0x2f8] sm:$0xff]
        %v1729 = vrot.slane %v1622, 1
        %v1730 = vrot.slane %v1524, 1
        %v1731 = vsel %vm544, %v1729, %v1730
        %v1732 = vrot.slane %v1623, 1
        %v1733 = vrot.slane %v1525, 1
        %v1734 = vsel %vm544, %v1732, %v1733
        %v1735 = vrot.slane %v1624, 1
        %v1736 = vsel %vm544, %v1730, %v1735
        %v1737 = vrot.slane %v1625, 1
        %v1738 = vsel %vm544, %v1733, %v1737
        %v1741 = vsel %vm1517, %v1734, 0
        %v1743 = vsel %vm1517, %v1738, 0
        %1745 = vmatprep.subr.mxu0 %v1628
        %1746 = vmatpush1.msra.mxu0 %v1627
        %1747 = vmatprep.subr.mxu0 %v1632
        %1748 = vmatpush1.msra.mxu0 %v1631
        %1749 = vmatprep.subr.mxu0 %v1636
        %1750 = vmatpush1.msra.mxu0 %v1635
        %1751 = vmatprep.subr.mxu0 %v1640
        %1752 = vmatpush1.msra.mxu0 %v1639
        %1753 = vmatprep.subr.mxu0 %v1644
        %1754 = vmatpush1.msra.mxu0 %v1643
        %1755 = vmatprep.subr.mxu0 %v1648
        %1756 = vmatpush1.msra.mxu0 %v1647
        %1757 = vmatprep.subr.mxu0 %v1652
        %1758 = vmatpush1.msra.mxu0 %v1651
        %1759 = vmatprep.subr.mxu0 %v1656
        %1760 = vmatpush1.msra.mxu0 %v1655
        %1761 = vmatprep.subr.mxu0 %v1660
        %1762 = vmatpush1.msra.mxu0 %v1659
        %1763 = vmatprep.subr.mxu0 %v1664
        %1764 = vmatpush1.msra.mxu0 %v1663
        %1765 = vmatprep.subr.mxu0 %v1668
        %1766 = vmatpush1.msra.mxu0 %v1667
        %1767 = vmatprep.subr.mxu0 %v1672
        %1768 = vmatpush1.msra.mxu0 %v1671
        %1769 = vmatprep.subr.mxu0 %v1676
        %1770 = vmatpush1.msra.mxu0 %v1675
        %1771 = vmatprep.subr.mxu0 %v1680
        %1772 = vmatpush1.msra.mxu0 %v1679
        %1773 = vmatprep.subr.mxu0 %v1684
        %1774 = vmatpush1.msra.mxu0 %v1683
        %1775 = vmatprep.subr.mxu0 %v1688
        %1776 = vmatpush1.msra.mxu0 %v1687
        %1777 = vmatprep.subr.mxu0 %v1692
        %1778 = vmatpush1.msra.mxu0 %v1691
        %1779 = vmatprep.subr.mxu0 %v1696
        %1780 = vmatpush1.msra.mxu0 %v1695
        %1781 = vmatprep.subr.mxu0 %v1700
        %1782 = vmatpush1.msra.mxu0 %v1699
        %1783 = vmatprep.subr.mxu0 %v1704
        %1784 = vmatpush1.msra.mxu0 %v1703
        %1785 = vmatprep.subr.mxu0 %v1708
        %1786 = vmatpush1.msra.mxu0 %v1707
        %1787 = vmatprep.subr.mxu0 %v1712
        %1788 = vmatpush1.msra.mxu0 %v1711
        %1789 = vmatprep.subr.mxu0 %v1716
        %1790 = vmatpush1.msra.mxu0 %v1715
        %1791 = vmatprep.subr.mxu0 %v1720
        %1792 = vmatpush1.msra.mxu0 %v1719
        %1793 = vmatprep.subr.mxu0 0.0
        %1794 = vmatpush1.msra.mxu0 0.0
        %1795 = vmatprep.subr.mxu0 0.0
        %1796 = vmatpush1.msra.mxu0 0.0
        %1797 = vmatprep.subr.mxu0 0.0
        %1798 = vmatpush1.msra.mxu0 0.0
        %1799 = vmatprep.subr.mxu0 0.0
        %1800 = vmatpush1.msra.mxu0 0.0
        %1801 = vmatprep.subr.mxu0 0.0
        %1802 = vmatpush1.msra.mxu0 0.0
        %1803 = vmatprep.subr.mxu0 0.0
        %1804 = vmatpush1.msra.mxu0 0.0
        %1805 = vmatprep.subr.mxu0 0.0
        %1806 = vmatpush1.msra.mxu0 0.0
        %1807 = vmatprep.subr.mxu0 0.0
        %1808 = vmatpush1.msra.mxu0 0.0
        %1809 = vmatprep.mubr.f32.mxu0 %v1741
        %1810 = vmatmul.mubr.f32.gmra.mrb[0].mxu0 %v1731
        %v1811 = vpop.f32.mrb[0].mxu0
        %v1812 = vadd.f32 0.0, %v1811
        %v1813 = vpop.f32.mrb[0].mxu0
        %v1814 = vadd.f32 0.0, %v1813
        %1815 = vmatprep.mubr.f32.mxu0 %v1743
        %1816 = vmatmul.mubr.f32.gmra.mrb[0].mxu0 %v1736
        %v1817 = vpop.f32.mrb[0].mxu0
        %v1818 = vadd.f32 0.0, %v1817
        %v1819 = vpop.f32.mrb[0].mxu0
        %v1820 = vadd.f32 0.0, %v1819
        %1821 = vdwg.mxu0
        %1822 = vmatprep.subr.mxu0 %v1630
        %1823 = vmatpush1.msra.mxu0 %v1629
        %1824 = vmatprep.subr.mxu0 %v1634
        %1825 = vmatpush1.msra.mxu0 %v1633
        %1826 = vmatprep.subr.mxu0 %v1638
        %1827 = vmatpush1.msra.mxu0 %v1637
        %1828 = vmatprep.subr.mxu0 %v1642
        %1829 = vmatpush1.msra.mxu0 %v1641
        %1830 = vmatprep.subr.mxu0 %v1646
        %1831 = vmatpush1.msra.mxu0 %v1645
        %1832 = vmatprep.subr.mxu0 %v1650
        %1833 = vmatpush1.msra.mxu0 %v1649
        %1834 = vmatprep.subr.mxu0 %v1654
        %1835 = vmatpush1.msra.mxu0 %v1653
        %1836 = vmatprep.subr.mxu0 %v1658
        %1837 = vmatpush1.msra.mxu0 %v1657
        %1838 = vmatprep.subr.mxu0 %v1662
        %1839 = vmatpush1.msra.mxu0 %v1661
        %1840 = vmatprep.subr.mxu0 %v1666
        %1841 = vmatpush1.msra.mxu0 %v1665
        %1842 = vmatprep.subr.mxu0 %v1670
        %1843 = vmatpush1.msra.mxu0 %v1669
        %1844 = vmatprep.subr.mxu0 %v1674
        %1845 = vmatpush1.msra.mxu0 %v1673
        %1846 = vmatprep.subr.mxu0 %v1678
        %1847 = vmatpush1.msra.mxu0 %v1677
        %1848 = vmatprep.subr.mxu0 %v1682
        %1849 = vmatpush1.msra.mxu0 %v1681
        %1850 = vmatprep.subr.mxu0 %v1686
        %1851 = vmatpush1.msra.mxu0 %v1685
        %1852 = vmatprep.subr.mxu0 %v1690
        %1853 = vmatpush1.msra.mxu0 %v1689
        %1854 = vmatprep.subr.mxu0 %v1694
        %1855 = vmatpush1.msra.mxu0 %v1693
        %1856 = vmatprep.subr.mxu0 %v1698
        %1857 = vmatpush1.msra.mxu0 %v1697
        %1858 = vmatprep.subr.mxu0 %v1702
        %1859 = vmatpush1.msra.mxu0 %v1701
        %1860 = vmatprep.subr.mxu0 %v1706
        %1861 = vmatpush1.msra.mxu0 %v1705
        %1862 = vmatprep.subr.mxu0 %v1710
        %1863 = vmatpush1.msra.mxu0 %v1709
        %1864 = vmatprep.subr.mxu0 %v1714
        %1865 = vmatpush1.msra.mxu0 %v1713
        %1866 = vmatprep.subr.mxu0 %v1718
        %1867 = vmatpush1.msra.mxu0 %v1717
        %1868 = vmatprep.subr.mxu0 %v1722
        %1869 = vmatpush1.msra.mxu0 %v1721
        %1870 = vmatprep.subr.mxu0 0.0
        %1871 = vmatpush1.msra.mxu0 0.0
        %1872 = vmatprep.subr.mxu0 0.0
        %1873 = vmatpush1.msra.mxu0 0.0
        %1874 = vmatprep.subr.mxu0 0.0
        %1875 = vmatpush1.msra.mxu0 0.0
        %1876 = vmatprep.subr.mxu0 0.0
        %1877 = vmatpush1.msra.mxu0 0.0
        %1878 = vmatprep.subr.mxu0 0.0
        %1879 = vmatpush1.msra.mxu0 0.0
        %1880 = vmatprep.subr.mxu0 0.0
        %1881 = vmatpush1.msra.mxu0 0.0
        %1882 = vmatprep.subr.mxu0 0.0
        %1883 = vmatpush1.msra.mxu0 0.0
        %1884 = vmatprep.subr.mxu0 0.0
        %1885 = vmatpush1.msra.mxu0 0.0
        %1886 = vmatprep.mubr.f32.mxu0 %v1741
        %1887 = vmatmul.mubr.f32.gmra.mrb[0].mxu0 %v1731
        %v1888 = vpop.f32.mrb[0].mxu0
        %v1889 = vadd.f32 0.0, %v1888
        %v1890 = vpop.f32.mrb[0].mxu0
        %v1891 = vadd.f32 0.0, %v1890
        %1892 = vmatprep.mubr.f32.mxu0 %v1743
        %1893 = vmatmul.mubr.f32.gmra.mrb[0].mxu0 %v1736
        %v1894 = vpop.f32.mrb[0].mxu0
        %v1895 = vadd.f32 0.0, %v1894
        %v1896 = vpop.f32.mrb[0].mxu0
        %v1897 = vadd.f32 0.0, %v1896
        %1898 = vdwg.mxu0
        %v1900 = vsel %vm1517, %v1523, 0
        %v1902 = vsel %vm1517, %v1525, 0
        %1904 = vmatprep.subr.mxu0 %v1527
        %1905 = vmatpush1.msra.mxu0 %v1526
        %1906 = vmatprep.subr.mxu0 %v1531
        %1907 = vmatpush1.msra.mxu0 %v1530
        %1908 = vmatprep.subr.mxu0 %v1535
        %1909 = vmatpush1.msra.mxu0 %v1534
        %1910 = vmatprep.subr.mxu0 %v1539
        %1911 = vmatpush1.msra.mxu0 %v1538
        %1912 = vmatprep.subr.mxu0 %v1543
        %1913 = vmatpush1.msra.mxu0 %v1542
        %1914 = vmatprep.subr.mxu0 %v1547
        %1915 = vmatpush1.msra.mxu0 %v1546
        %1916 = vmatprep.subr.mxu0 %v1551
        %1917 = vmatpush1.msra.mxu0 %v1550
        %1918 = vmatprep.subr.mxu0 %v1555
        %1919 = vmatpush1.msra.mxu0 %v1554
        %1920 = vmatprep.subr.mxu0 %v1559
        %1921 = vmatpush1.msra.mxu0 %v1558
        %1922 = vmatprep.subr.mxu0 %v1563
        %1923 = vmatpush1.msra.mxu0 %v1562
        %1924 = vmatprep.subr.mxu0 %v1567
        %1925 = vmatpush1.msra.mxu0 %v1566
        %1926 = vmatprep.subr.mxu0 %v1571
        %1927 = vmatpush1.msra.mxu0 %v1570
        %1928 = vmatprep.subr.mxu0 %v1575
        %1929 = vmatpush1.msra.mxu0 %v1574
        %1930 = vmatprep.subr.mxu0 %v1579
        %1931 = vmatpush1.msra.mxu0 %v1578
        %1932 = vmatprep.subr.mxu0 %v1583
        %1933 = vmatpush1.msra.mxu0 %v1582
        %1934 = vmatprep.subr.mxu0 %v1587
        %1935 = vmatpush1.msra.mxu0 %v1586
        %1936 = vmatprep.subr.mxu0 %v1591
        %1937 = vmatpush1.msra.mxu0 %v1590
        %1938 = vmatprep.subr.mxu0 %v1595
        %1939 = vmatpush1.msra.mxu0 %v1594
        %1940 = vmatprep.subr.mxu0 %v1599
        %1941 = vmatpush1.msra.mxu0 %v1598
        %1942 = vmatprep.subr.mxu0 %v1603
        %1943 = vmatpush1.msra.mxu0 %v1602
        %1944 = vmatprep.subr.mxu0 %v1607
        %1945 = vmatpush1.msra.mxu0 %v1606
        %1946 = vmatprep.subr.mxu0 %v1611
        %1947 = vmatpush1.msra.mxu0 %v1610
        %1948 = vmatprep.subr.mxu0 %v1615
        %1949 = vmatpush1.msra.mxu0 %v1614
        %1950 = vmatprep.subr.mxu0 %v1619
        %1951 = vmatpush1.msra.mxu0 %v1618
        %1952 = vmatprep.subr.mxu0 0.0
        %1953 = vmatpush1.msra.mxu0 0.0
        %1954 = vmatprep.subr.mxu0 0.0
        %1955 = vmatpush1.msra.mxu0 0.0
        %1956 = vmatprep.subr.mxu0 0.0
        %1957 = vmatpush1.msra.mxu0 0.0
        %1958 = vmatprep.subr.mxu0 0.0
        %1959 = vmatpush1.msra.mxu0 0.0
        %1960 = vmatprep.subr.mxu0 0.0
        %1961 = vmatpush1.msra.mxu0 0.0
        %1962 = vmatprep.subr.mxu0 0.0
        %1963 = vmatpush1.msra.mxu0 0.0
        %1964 = vmatprep.subr.mxu0 0.0
        %1965 = vmatpush1.msra.mxu0 0.0
        %1966 = vmatprep.subr.mxu0 0.0
        %1967 = vmatpush1.msra.mxu0 0.0
        %1968 = vmatprep.mubr.f32.mxu0 %v1900
        %1969 = vmatmul.mubr.f32.gmra.mrb[0].mxu0 %v1522
        %v1970 = vpop.f32.mrb[0].mxu0
        %v1971 = vadd.f32 %v1812, %v1970
        %v1972 = vpop.f32.mrb[0].mxu0
        %v1973 = vadd.f32 %v1814, %v1972
        %1974 = vmatprep.mubr.f32.mxu0 %v1902
        %1975 = vmatmul.mubr.f32.gmra.mrb[0].mxu0 %v1524
        %v1976 = vpop.f32.mrb[0].mxu0
        %v1977 = vadd.f32 %v1818, %v1976
        %v1978 = vpop.f32.mrb[0].mxu0
        %v1979 = vadd.f32 %v1820, %v1978
        %1980 = vdwg.mxu0
        %1981 = vmatprep.subr.mxu0 %v1529
        %1982 = vmatpush1.msra.mxu0 %v1528
        %1983 = vmatprep.subr.mxu0 %v1533
        %1984 = vmatpush1.msra.mxu0 %v1532
        %1985 = vmatprep.subr.mxu0 %v1537
        %1986 = vmatpush1.msra.mxu0 %v1536
        %1987 = vmatprep.subr.mxu0 %v1541
        %1988 = vmatpush1.msra.mxu0 %v1540
        %1989 = vmatprep.subr.mxu0 %v1545
        %1990 = vmatpush1.msra.mxu0 %v1544
        %1991 = vmatprep.subr.mxu0 %v1549
        %1992 = vmatpush1.msra.mxu0 %v1548
        %1993 = vmatprep.subr.mxu0 %v1553
        %1994 = vmatpush1.msra.mxu0 %v1552
        %1995 = vmatprep.subr.mxu0 %v1557
        %1996 = vmatpush1.msra.mxu0 %v1556
        %1997 = vmatprep.subr.mxu0 %v1561
        %1998 = vmatpush1.msra.mxu0 %v1560
        %1999 = vmatprep.subr.mxu0 %v1565
        %2000 = vmatpush1.msra.mxu0 %v1564
        %2001 = vmatprep.subr.mxu0 %v1569
        %2002 = vmatpush1.msra.mxu0 %v1568
        %2003 = vmatprep.subr.mxu0 %v1573
        %2004 = vmatpush1.msra.mxu0 %v1572
        %2005 = vmatprep.subr.mxu0 %v1577
        %2006 = vmatpush1.msra.mxu0 %v1576
        %2007 = vmatprep.subr.mxu0 %v1581
        %2008 = vmatpush1.msra.mxu0 %v1580
        %2009 = vmatprep.subr.mxu0 %v1585
        %2010 = vmatpush1.msra.mxu0 %v1584
        %2011 = vmatprep.subr.mxu0 %v1589
        %2012 = vmatpush1.msra.mxu0 %v1588
        %2013 = vmatprep.subr.mxu0 %v1593
        %2014 = vmatpush1.msra.mxu0 %v1592
        %2015 = vmatprep.subr.mxu0 %v1597
        %2016 = vmatpush1.msra.mxu0 %v1596
        %2017 = vmatprep.subr.mxu0 %v1601
        %2018 = vmatpush1.msra.mxu0 %v1600
        %2019 = vmatprep.subr.mxu0 %v1605
        %2020 = vmatpush1.msra.mxu0 %v1604
        %2021 = vmatprep.subr.mxu0 %v1609
        %2022 = vmatpush1.msra.mxu0 %v1608
        %2023 = vmatprep.subr.mxu0 %v1613
        %2024 = vmatpush1.msra.mxu0 %v1612
        %2025 = vmatprep.subr.mxu0 %v1617
        %2026 = vmatpush1.msra.mxu0 %v1616
        %2027 = vmatprep.subr.mxu0 %v1621
        %2028 = vmatpush1.msra.mxu0 %v1620
        %2029 = vmatprep.subr.mxu0 0.0
        %2030 = vmatpush1.msra.mxu0 0.0
        %2031 = vmatprep.subr.mxu0 0.0
        %2032 = vmatpush1.msra.mxu0 0.0
        %2033 = vmatprep.subr.mxu0 0.0
        %2034 = vmatpush1.msra.mxu0 0.0
        %2035 = vmatprep.subr.mxu0 0.0
        %2036 = vmatpush1.msra.mxu0 0.0
        %2037 = vmatprep.subr.mxu0 0.0
        %2038 = vmatpush1.msra.mxu0 0.0
        %2039 = vmatprep.subr.mxu0 0.0
        %2040 = vmatpush1.msra.mxu0 0.0
        %2041 = vmatprep.subr.mxu0 0.0
        %2042 = vmatpush1.msra.mxu0 0.0
        %2043 = vmatprep.subr.mxu0 0.0
        %2044 = vmatpush1.msra.mxu0 0.0
        %2045 = vmatprep.mubr.f32.mxu0 %v1900
        %2046 = vmatmul.mubr.f32.gmra.mrb[0].mxu0 %v1522
        %v2047 = vpop.f32.mrb[0].mxu0
        %v2048 = vadd.f32 %v1889, %v2047
        %v2049 = vpop.f32.mrb[0].mxu0
        %v2050 = vadd.f32 %v1891, %v2049
        %2051 = vmatprep.mubr.f32.mxu0 %v1902
        %2052 = vmatmul.mubr.f32.gmra.mrb[0].mxu0 %v1524
        %v2053 = vpop.f32.mrb[0].mxu0
        %v2054 = vadd.f32 %v1895, %v2053
        %v2055 = vpop.f32.mrb[0].mxu0
        %v2056 = vadd.f32 %v1897, %v2055
        %2057 = vdwg.mxu0
        %v2058 = vld [vmem:[#allocation2] sm:$0xfc]
        %v2059 = vld [vmem:[#allocation2 + $0x8] sm:$0xfc]
        %v2060 = vld [vmem:[#allocation2 + $0x20] sm:$0x3]
        %v2061 = vld [vmem:[#allocation2 + $0x28] sm:$0x3]
        %s2062 = scalar_lea.vmem %s3, 1536
        %v2063 = vld [vmem:[%s2062] sm:$0xff]
        %v2064 = vld [vmem:[%s2062 + $0x8] sm:$0xff]
        %v2065 = vld [vmem:[%s2062 + $0x10] sm:$0xff]
        %v2066 = vld [vmem:[%s2062 + $0x18] sm:$0xff]
        %v2067 = vld [vmem:[%s2062 + $0x20] sm:$0xff]
        %v2068 = vld [vmem:[%s2062 + $0x28] sm:$0xff]
        %v2069 = vld [vmem:[%s2062 + $0x30] sm:$0xff]
        %v2070 = vld [vmem:[%s2062 + $0x38] sm:$0xff]
        %v2071 = vld [vmem:[%s2062 + $0x40] sm:$0xff]
        %v2072 = vld [vmem:[%s2062 + $0x48] sm:$0xff]
        %v2073 = vld [vmem:[%s2062 + $0x50] sm:$0xff]
        %v2074 = vld [vmem:[%s2062 + $0x58] sm:$0xff]
        %v2075 = vld [vmem:[%s2062 + $0x60] sm:$0xff]
        %v2076 = vld [vmem:[%s2062 + $0x68] sm:$0xff]
        %v2077 = vld [vmem:[%s2062 + $0x70] sm:$0xff]
        %v2078 = vld [vmem:[%s2062 + $0x78] sm:$0xff]
        %v2079 = vld [vmem:[%s2062 + $0x80] sm:$0xff]
        %v2080 = vld [vmem:[%s2062 + $0x88] sm:$0xff]
        %v2081 = vld [vmem:[%s2062 + $0x90] sm:$0xff]
        %v2082 = vld [vmem:[%s2062 + $0x98] sm:$0xff]
        %v2083 = vld [vmem:[%s2062 + $0xa0] sm:$0xff]
        %v2084 = vld [vmem:[%s2062 + $0xa8] sm:$0xff]
        %v2085 = vld [vmem:[%s2062 + $0xb0] sm:$0xff]
        %v2086 = vld [vmem:[%s2062 + $0xb8] sm:$0xff]
        %v2087 = vld [vmem:[%s2062 + $0xc0] sm:$0xff]
        %v2088 = vld [vmem:[%s2062 + $0xc8] sm:$0xff]
        %v2089 = vld [vmem:[%s2062 + $0xd0] sm:$0xff]
        %v2090 = vld [vmem:[%s2062 + $0xd8] sm:$0xff]
        %v2091 = vld [vmem:[%s2062 + $0xe0] sm:$0xff]
        %v2092 = vld [vmem:[%s2062 + $0xe8] sm:$0xff]
        %v2093 = vld [vmem:[%s2062 + $0xf0] sm:$0xff]
        %v2094 = vld [vmem:[%s2062 + $0xf8] sm:$0xff]
        %v2095 = vld [vmem:[%s2062 + $0x100] sm:$0xff]
        %v2096 = vld [vmem:[%s2062 + $0x108] sm:$0xff]
        %v2097 = vld [vmem:[%s2062 + $0x110] sm:$0xff]
        %v2098 = vld [vmem:[%s2062 + $0x118] sm:$0xff]
        %v2099 = vld [vmem:[%s2062 + $0x120] sm:$0xff]
        %v2100 = vld [vmem:[%s2062 + $0x128] sm:$0xff]
        %v2101 = vld [vmem:[%s2062 + $0x130] sm:$0xff]
        %v2102 = vld [vmem:[%s2062 + $0x138] sm:$0xff]
        %v2103 = vld [vmem:[%s2062 + $0x140] sm:$0xff]
        %v2104 = vld [vmem:[%s2062 + $0x148] sm:$0xff]
        %v2105 = vld [vmem:[%s2062 + $0x150] sm:$0xff]
        %v2106 = vld [vmem:[%s2062 + $0x158] sm:$0xff]
        %v2107 = vld [vmem:[%s2062 + $0x160] sm:$0xff]
        %v2108 = vld [vmem:[%s2062 + $0x168] sm:$0xff]
        %v2109 = vld [vmem:[%s2062 + $0x170] sm:$0xff]
        %v2110 = vld [vmem:[%s2062 + $0x178] sm:$0xff]
        %v2111 = vld [vmem:[%s2062 + $0x180] sm:$0xff]
        %v2112 = vld [vmem:[%s2062 + $0x188] sm:$0xff]
        %v2113 = vld [vmem:[%s2062 + $0x190] sm:$0xff]
        %v2114 = vld [vmem:[%s2062 + $0x198] sm:$0xff]
        %v2115 = vld [vmem:[%s2062 + $0x1a0] sm:$0xff]
        %v2116 = vld [vmem:[%s2062 + $0x1a8] sm:$0xff]
        %v2117 = vld [vmem:[%s2062 + $0x1b0] sm:$0xff]
        %v2118 = vld [vmem:[%s2062 + $0x1b8] sm:$0xff]
        %v2119 = vld [vmem:[%s2062 + $0x1c0] sm:$0xff]
        %v2120 = vld [vmem:[%s2062 + $0x1c8] sm:$0xff]
        %v2121 = vld [vmem:[%s2062 + $0x1d0] sm:$0xff]
        %v2122 = vld [vmem:[%s2062 + $0x1d8] sm:$0xff]
        %v2123 = vld [vmem:[%s2062 + $0x1e0] sm:$0xff]
        %v2124 = vld [vmem:[%s2062 + $0x1e8] sm:$0xff]
        %v2125 = vld [vmem:[%s2062 + $0x1f0] sm:$0xff]
        %v2126 = vld [vmem:[%s2062 + $0x1f8] sm:$0xff]
        %v2127 = vld [vmem:[%s2062 + $0x200] sm:$0xff]
        %v2128 = vld [vmem:[%s2062 + $0x208] sm:$0xff]
        %v2129 = vld [vmem:[%s2062 + $0x210] sm:$0xff]
        %v2130 = vld [vmem:[%s2062 + $0x218] sm:$0xff]
        %v2131 = vld [vmem:[%s2062 + $0x220] sm:$0xff]
        %v2132 = vld [vmem:[%s2062 + $0x228] sm:$0xff]
        %v2133 = vld [vmem:[%s2062 + $0x230] sm:$0xff]
        %v2134 = vld [vmem:[%s2062 + $0x238] sm:$0xff]
        %v2135 = vld [vmem:[%s2062 + $0x240] sm:$0xff]
        %v2136 = vld [vmem:[%s2062 + $0x248] sm:$0xff]
        %v2137 = vld [vmem:[%s2062 + $0x250] sm:$0xff]
        %v2138 = vld [vmem:[%s2062 + $0x258] sm:$0xff]
        %v2139 = vld [vmem:[%s2062 + $0x260] sm:$0xff]
        %v2140 = vld [vmem:[%s2062 + $0x268] sm:$0xff]
        %v2141 = vld [vmem:[%s2062 + $0x270] sm:$0xff]
        %v2142 = vld [vmem:[%s2062 + $0x278] sm:$0xff]
        %v2143 = vld [vmem:[%s2062 + $0x280] sm:$0xff]
        %v2144 = vld [vmem:[%s2062 + $0x288] sm:$0xff]
        %v2145 = vld [vmem:[%s2062 + $0x290] sm:$0xff]
        %v2146 = vld [vmem:[%s2062 + $0x298] sm:$0xff]
        %v2147 = vld [vmem:[%s2062 + $0x2a0] sm:$0xff]
        %v2148 = vld [vmem:[%s2062 + $0x2a8] sm:$0xff]
        %v2149 = vld [vmem:[%s2062 + $0x2b0] sm:$0xff]
        %v2150 = vld [vmem:[%s2062 + $0x2b8] sm:$0xff]
        %v2151 = vld [vmem:[%s2062 + $0x2c0] sm:$0xff]
        %v2152 = vld [vmem:[%s2062 + $0x2c8] sm:$0xff]
        %v2153 = vld [vmem:[%s2062 + $0x2d0] sm:$0xff]
        %v2154 = vld [vmem:[%s2062 + $0x2d8] sm:$0xff]
        %v2155 = vld [vmem:[%s2062 + $0x2e0] sm:$0xff]
        %v2156 = vld [vmem:[%s2062 + $0x2e8] sm:$0xff]
        %v2157 = vld [vmem:[%s2062 + $0x2f0] sm:$0xff]
        %v2158 = vld [vmem:[%s2062 + $0x2f8] sm:$0xff]
        %v2163 = vrot.slane %v2058, 2
        %v2164 = vrot.slane %v1524, 2
        %v2165 = vsel %vm343, %v2163, %v2164
        %v2166 = vrot.slane %v2059, 2
        %v2167 = vrot.slane %v1525, 2
        %v2168 = vsel %vm343, %v2166, %v2167
        %v2169 = vrot.slane %v2060, 2
        %v2170 = vsel %vm343, %v2164, %v2169
        %v2171 = vrot.slane %v2061, 2
        %v2172 = vsel %vm343, %v2167, %v2171
        %v2175 = vsel %vm1517, %v2168, 0
        %v2177 = vsel %vm1517, %v2172, 0
        %2179 = vmatprep.subr.mxu0 %v2064
        %2180 = vmatpush1.msra.mxu0 %v2063
        %2181 = vmatprep.subr.mxu0 %v2068
        %2182 = vmatpush1.msra.mxu0 %v2067
        %2183 = vmatprep.subr.mxu0 %v2072
        %2184 = vmatpush1.msra.mxu0 %v2071
        %2185 = vmatprep.subr.mxu0 %v2076
        %2186 = vmatpush1.msra.mxu0 %v2075
        %2187 = vmatprep.subr.mxu0 %v2080
        %2188 = vmatpush1.msra.mxu0 %v2079
        %2189 = vmatprep.subr.mxu0 %v2084
        %2190 = vmatpush1.msra.mxu0 %v2083
        %2191 = vmatprep.subr.mxu0 %v2088
        %2192 = vmatpush1.msra.mxu0 %v2087
        %2193 = vmatprep.subr.mxu0 %v2092
        %2194 = vmatpush1.msra.mxu0 %v2091
        %2195 = vmatprep.subr.mxu0 %v2096
        %2196 = vmatpush1.msra.mxu0 %v2095
        %2197 = vmatprep.subr.mxu0 %v2100
        %2198 = vmatpush1.msra.mxu0 %v2099
        %2199 = vmatprep.subr.mxu0 %v2104
        %2200 = vmatpush1.msra.mxu0 %v2103
        %2201 = vmatprep.subr.mxu0 %v2108
        %2202 = vmatpush1.msra.mxu0 %v2107
        %2203 = vmatprep.subr.mxu0 %v2112
        %2204 = vmatpush1.msra.mxu0 %v2111
        %2205 = vmatprep.subr.mxu0 %v2116
        %2206 = vmatpush1.msra.mxu0 %v2115
        %2207 = vmatprep.subr.mxu0 %v2120
        %2208 = vmatpush1.msra.mxu0 %v2119
        %2209 = vmatprep.subr.mxu0 %v2124
        %2210 = vmatpush1.msra.mxu0 %v2123
        %2211 = vmatprep.subr.mxu0 %v2128
        %2212 = vmatpush1.msra.mxu0 %v2127
        %2213 = vmatprep.subr.mxu0 %v2132
        %2214 = vmatpush1.msra.mxu0 %v2131
        %2215 = vmatprep.subr.mxu0 %v2136
        %2216 = vmatpush1.msra.mxu0 %v2135
        %2217 = vmatprep.subr.mxu0 %v2140
        %2218 = vmatpush1.msra.mxu0 %v2139
        %2219 = vmatprep.subr.mxu0 %v2144
        %2220 = vmatpush1.msra.mxu0 %v2143
        %2221 = vmatprep.subr.mxu0 %v2148
        %2222 = vmatpush1.msra.mxu0 %v2147
        %2223 = vmatprep.subr.mxu0 %v2152
        %2224 = vmatpush1.msra.mxu0 %v2151
        %2225 = vmatprep.subr.mxu0 %v2156
        %2226 = vmatpush1.msra.mxu0 %v2155
        %2227 = vmatprep.subr.mxu0 0.0
        %2228 = vmatpush1.msra.mxu0 0.0
        %2229 = vmatprep.subr.mxu0 0.0
        %2230 = vmatpush1.msra.mxu0 0.0
        %2231 = vmatprep.subr.mxu0 0.0
        %2232 = vmatpush1.msra.mxu0 0.0
        %2233 = vmatprep.subr.mxu0 0.0
        %2234 = vmatpush1.msra.mxu0 0.0
        %2235 = vmatprep.subr.mxu0 0.0
        %2236 = vmatpush1.msra.mxu0 0.0
        %2237 = vmatprep.subr.mxu0 0.0
        %2238 = vmatpush1.msra.mxu0 0.0
        %2239 = vmatprep.subr.mxu0 0.0
        %2240 = vmatpush1.msra.mxu0 0.0
        %2241 = vmatprep.subr.mxu0 0.0
        %2242 = vmatpush1.msra.mxu0 0.0
        %2243 = vmatprep.mubr.f32.mxu0 %v2175
        %2244 = vmatmul.mubr.f32.gmra.mrb[0].mxu0 %v2165
        %v2245 = vpop.f32.mrb[0].mxu0
        %v2246 = vadd.f32 0.0, %v2245
        %v2247 = vpop.f32.mrb[0].mxu0
        %v2248 = vadd.f32 0.0, %v2247
        %2249 = vmatprep.mubr.f32.mxu0 %v2177
        %2250 = vmatmul.mubr.f32.gmra.mrb[0].mxu0 %v2170
        %v2251 = vpop.f32.mrb[0].mxu0
        %v2252 = vadd.f32 0.0, %v2251
        %v2253 = vpop.f32.mrb[0].mxu0
        %v2254 = vadd.f32 0.0, %v2253
        %2255 = vdwg.mxu0
        %2256 = vmatprep.subr.mxu0 %v2066
        %2257 = vmatpush1.msra.mxu0 %v2065
        %2258 = vmatprep.subr.mxu0 %v2070
        %2259 = vmatpush1.msra.mxu0 %v2069
        %2260 = vmatprep.subr.mxu0 %v2074
        %2261 = vmatpush1.msra.mxu0 %v2073
        %2262 = vmatprep.subr.mxu0 %v2078
        %2263 = vmatpush1.msra.mxu0 %v2077
        %2264 = vmatprep.subr.mxu0 %v2082
        %2265 = vmatpush1.msra.mxu0 %v2081
        %2266 = vmatprep.subr.mxu0 %v2086
        %2267 = vmatpush1.msra.mxu0 %v2085
        %2268 = vmatprep.subr.mxu0 %v2090
        %2269 = vmatpush1.msra.mxu0 %v2089
        %2270 = vmatprep.subr.mxu0 %v2094
        %2271 = vmatpush1.msra.mxu0 %v2093
        %2272 = vmatprep.subr.mxu0 %v2098
        %2273 = vmatpush1.msra.mxu0 %v2097
        %2274 = vmatprep.subr.mxu0 %v2102
        %2275 = vmatpush1.msra.mxu0 %v2101
        %2276 = vmatprep.subr.mxu0 %v2106
        %2277 = vmatpush1.msra.mxu0 %v2105
        %2278 = vmatprep.subr.mxu0 %v2110
        %2279 = vmatpush1.msra.mxu0 %v2109
        %2280 = vmatprep.subr.mxu0 %v2114
        %2281 = vmatpush1.msra.mxu0 %v2113
        %2282 = vmatprep.subr.mxu0 %v2118
        %2283 = vmatpush1.msra.mxu0 %v2117
        %2284 = vmatprep.subr.mxu0 %v2122
        %2285 = vmatpush1.msra.mxu0 %v2121
        %2286 = vmatprep.subr.mxu0 %v2126
        %2287 = vmatpush1.msra.mxu0 %v2125
        %2288 = vmatprep.subr.mxu0 %v2130
        %2289 = vmatpush1.msra.mxu0 %v2129
        %2290 = vmatprep.subr.mxu0 %v2134
        %2291 = vmatpush1.msra.mxu0 %v2133
        %2292 = vmatprep.subr.mxu0 %v2138
        %2293 = vmatpush1.msra.mxu0 %v2137
        %2294 = vmatprep.subr.mxu0 %v2142
        %2295 = vmatpush1.msra.mxu0 %v2141
        %2296 = vmatprep.subr.mxu0 %v2146
        %2297 = vmatpush1.msra.mxu0 %v2145
        %2298 = vmatprep.subr.mxu0 %v2150
        %2299 = vmatpush1.msra.mxu0 %v2149
        %2300 = vmatprep.subr.mxu0 %v2154
        %2301 = vmatpush1.msra.mxu0 %v2153
        %2302 = vmatprep.subr.mxu0 %v2158
        %2303 = vmatpush1.msra.mxu0 %v2157
        %2304 = vmatprep.subr.mxu0 0.0
        %2305 = vmatpush1.msra.mxu0 0.0
        %2306 = vmatprep.subr.mxu0 0.0
        %2307 = vmatpush1.msra.mxu0 0.0
        %2308 = vmatprep.subr.mxu0 0.0
        %2309 = vmatpush1.msra.mxu0 0.0
        %2310 = vmatprep.subr.mxu0 0.0
        %2311 = vmatpush1.msra.mxu0 0.0
        %2312 = vmatprep.subr.mxu0 0.0
        %2313 = vmatpush1.msra.mxu0 0.0
        %2314 = vmatprep.subr.mxu0 0.0
        %2315 = vmatpush1.msra.mxu0 0.0
        %2316 = vmatprep.subr.mxu0 0.0
        %2317 = vmatpush1.msra.mxu0 0.0
        %2318 = vmatprep.subr.mxu0 0.0
        %2319 = vmatpush1.msra.mxu0 0.0
        %2320 = vmatprep.mubr.f32.mxu0 %v2175
        %2321 = vmatmul.mubr.f32.gmra.mrb[0].mxu0 %v2165
        %v2322 = vpop.f32.mrb[0].mxu0
        %v2323 = vadd.f32 0.0, %v2322
        %v2324 = vpop.f32.mrb[0].mxu0
        %v2325 = vadd.f32 0.0, %v2324
        %2326 = vmatprep.mubr.f32.mxu0 %v2177
        %2327 = vmatmul.mubr.f32.gmra.mrb[0].mxu0 %v2170
        %v2328 = vpop.f32.mrb[0].mxu0
        %v2329 = vadd.f32 0.0, %v2328
        %v2330 = vpop.f32.mrb[0].mxu0
        %v2331 = vadd.f32 0.0, %v2330
        %2332 = vdwg.mxu0
        %v2333 = vadd.f32 %v1971, %v2246
        %v2334 = vadd.f32 %v1973, %v2248
        %v2335 = vadd.f32 %v2048, %v2323
        %v2336 = vadd.f32 %v2050, %v2325
        %v2337 = vadd.f32 %v1977, %v2252
        %v2338 = vadd.f32 %v1979, %v2254
        %v2339 = vadd.f32 %v2054, %v2329
        %v2340 = vadd.f32 %v2056, %v2331
        %v2341 = vld [vmem:[%s4] sm:$0xf]
        %v2343 = vlaneseq
        %v2344 = vshrl.u32 %v2343, 7
        %v2345 = vsub.s32 0, %v2344
        %v2346 = vrot.slane %v2341, %v2345
        %v2347 = vlaneseq
        %v2348 = vshrl.u32 %v2347, 7
        %v2349 = vsub.s32 1, %v2348
        %v2350 = vrot.slane %v2341, %v2349
        %v2351 = vlaneseq
        %v2352 = vshrl.u32 %v2351, 7
        %v2353 = vsub.s32 2, %v2352
        %v2354 = vrot.slane %v2341, %v2353
        %v2355 = vlaneseq
        %v2356 = vshrl.u32 %v2355, 7
        %v2357 = vsub.s32 3, %v2356
        %v2358 = vrot.slane %v2341, %v2357
        %v2363 = vadd.f32 %v2333, %v2346
        %v2364 = vadd.f32 %v2334, %v2350
        %v2365 = vadd.f32 %v2335, %v2354
        %v2366 = vadd.f32 %v2336, %v2358
        %v2367 = vadd.f32 %v2337, %v2346
        %v2368 = vadd.f32 %v2338, %v2350
        %v2369 = vadd.f32 %v2339, %v2354
        %v2370 = vadd.f32 %v2340, %v2358
        %v2371 = vmax.f32 %v2363, 0.0
        %v2372 = vmax.f32 %v2364, 0.0
        %v2373 = vmax.f32 %v2365, 0.0
        %v2374 = vmax.f32 %v2366, 0.0
        %v2375 = vmax.f32 %v2367, 0.0
        %v2376 = vmax.f32 %v2368, 0.0
        %v2377 = vmax.f32 %v2369, 0.0
        %v2378 = vmax.f32 %v2370, 0.0
        %v2379 = vld [vmem:[%s5] sm:$0xff]
        %v2380 = vld [vmem:[%s5 + $0x8] sm:$0xff]
        %v2381 = vld [vmem:[%s5 + $0x10] sm:$0xff]
        %v2382 = vld [vmem:[%s5 + $0x18] sm:$0xff]
        %v2383 = vld [vmem:[%s5 + $0x20] sm:$0xff]
        %v2384 = vld [vmem:[%s5 + $0x28] sm:$0xff]
        %v2385 = vld [vmem:[%s5 + $0x30] sm:$0xff]
        %v2386 = vld [vmem:[%s5 + $0x38] sm:$0xff]
        %v2387 = vmul.f32 %v2371, %v2379
        %v2388 = vmul.f32 %v2372, %v2380
        %v2389 = vmul.f32 %v2373, %v2381
        %v2390 = vmul.f32 %v2374, %v2382
        %v2391 = vmul.f32 %v2375, %v2383
        %v2392 = vmul.f32 %v2376, %v2384
        %v2393 = vmul.f32 %v2377, %v2385
        %v2394 = vmul.f32 %v2378, %v2386
        %v2395 = vadd.f32 %v2387, %v2388
        %v2396 = vadd.f32 %v2395, %v2389
        %v2397 = vadd.f32 %v2396, %v2390
        %2398 = vadd.xlane.f32.xlu0 %v2397
        %v2399 = vpop.xlane.xlu0 %2398
        %v2400 = vadd.f32 %v2391, %v2392
        %v2401 = vadd.f32 %v2400, %v2393
        %v2402 = vadd.f32 %v2401, %v2394
        %2403 = vadd.xlane.f32.xlu0 %v2402
        %v2404 = vpop.xlane.xlu0 %2403
        %s2405 = scalar_lea.vmem %s5, 64
        %v2406 = vld [vmem:[%s2405] sm:$0xff]
        %v2407 = vld [vmem:[%s2405 + $0x8] sm:$0xff]
        %v2408 = vld [vmem:[%s2405 + $0x10] sm:$0xff]
        %v2409 = vld [vmem:[%s2405 + $0x18] sm:$0xff]
        %v2410 = vld [vmem:[%s2405 + $0x20] sm:$0xff]
        %v2411 = vld [vmem:[%s2405 + $0x28] sm:$0xff]
        %v2412 = vld [vmem:[%s2405 + $0x30] sm:$0xff]
        %v2413 = vld [vmem:[%s2405 + $0x38] sm:$0xff]
        %v2414 = vmul.f32 %v2371, %v2406
        %v2415 = vmul.f32 %v2372, %v2407
        %v2416 = vmul.f32 %v2373, %v2408
        %v2417 = vmul.f32 %v2374, %v2409
        %v2418 = vmul.f32 %v2375, %v2410
        %v2419 = vmul.f32 %v2376, %v2411
        %v2420 = vmul.f32 %v2377, %v2412
        %v2421 = vmul.f32 %v2378, %v2413
        %v2422 = vadd.f32 %v2414, %v2415
        %v2423 = vadd.f32 %v2422, %v2416
        %v2424 = vadd.f32 %v2423, %v2417
        %2425 = vadd.xlane.f32.xlu0 %v2424
        %v2426 = vpop.xlane.xlu0 %2425
        %v2427 = vadd.f32 %v2418, %v2419
        %v2428 = vadd.f32 %v2427, %v2420
        %v2429 = vadd.f32 %v2428, %v2421
        %2430 = vadd.xlane.f32.xlu0 %v2429
        %v2431 = vpop.xlane.xlu0 %2430
        %vm2432 = vcmask 7168
        %v2433 = vsel %vm2432, %v2399, %v2426
        %v2434 = vsel %vm2432, %v2404, %v2431
        %vm2435 = vcmask 15360
        %v2436 = vsel %vm2435, %v2433, 0.0
        %v2437 = vsel %vm2435, %v2434, 0.0
        %v2438 = vadd.f32 %v2436, %v2437
        %v2439 = vrot.slane %v2438, 4
        %v2440 = vadd.f32 %v2438, %v2439
        %v2441 = vrot.slane %v2440, 2
        %v2442 = vadd.f32 %v2440, %v2441
        %v2443 = vrot.slane %v2442, 1
        %v2444 = vadd.f32 %v2442, %v2443
        %v2445 = vld [vmem:[%s6] sm:$0x1]
        %v2446 = vadd.f32 %v2444, %v2445
        %vm2447 = vcmask 8192
        %2448 = vst.msk [vmem:[%s270] sm:$0x1] %vm2447, %v2446
        %s2449 = sand.u32 %s181, 1
        %s2450 = scalar_lea.sflag [#allocation4], %s2449
        %s2451 = sand.u32 %s181, 1
        %s2452 = scalar_lea.vmem [#allocation3], %s2451
        // Predicated region
        $region49: #{convnet_forward.1} parent=47 // pred_check
          %p2453 = pneg %p191
        $region50: #{convnet_forward.1} parent=47 // pred_check_branch
          %2455 = sbr.rel (%p2453) target = $region52
        $region51: #{convnet_forward.1} parent=47 // pred_region
          %s2457 = ssub.s32 16, 16
          %2458 = vsyncadd %s2450, %s2457
          %s2459 = smul.addr %s21, 16
          %s2460 = scalar_lea.hbm %s7, %s2459
          %s2462 = sshll.u32 %s2452, 4
          %s2463 = int_to_ptr.vmem [resolvable:$true] %s2462
          %2465 = dma.vmem_to_hbm [thread:$0]  %s2463, 16, %s2460, %s2450
        $region52: #{convnet_forward.1} parent=47 // pred_fallthru
          _
      $region48: #{convnet_forward.1} parent=5 // pred_fallthru
        _
      %p2466 = scmp.le.s32.totalorder 2, %s16
      // Predicated region
      $region53: #{convnet_forward.1} parent=5 // pred_check
        %p2467 = pneg %p2466
      $region54: #{convnet_forward.1} parent=5 // pred_check_branch
        %2469 = sbr.rel (%p2467) target = $region56
      $region55: #{convnet_forward.1} parent=5 // pred_region
        %s2470 = ssub.s32 %s16, 2
        // Predicated region
        $region57: #{convnet_forward.1} parent=55 // pred_check
          %p2471 = pneg %p197
        $region58: #{convnet_forward.1} parent=55 // pred_check_branch
          %2473 = sbr.rel (%p2471) target = $region60
        $region59: #{convnet_forward.1} parent=55 // pred_region
          %s2474 = sand.u32 %s182, 1
          %s2475 = scalar_lea.sflag [#allocation4], %s2474
          %s2476 = sand.u32 %s182, 1
          %s2477 = scalar_lea.vmem [#allocation3], %s2476
          %2478 = dma.done %s2475, 16
        $region60: #{convnet_forward.1} parent=55 // pred_fallthru
          _
      $region56: #{convnet_forward.1} parent=5 // pred_fallthru
        _
    $region6: #{convnet_forward.1} parent=1 // loop_footer
      %s20 = sadd.s32 1, %s16
    $region7: #{convnet_forward.1} parent=1 // loop_footer_branch
      %15 = sbr.rel target = $region3
    $region8: #{convnet_forward.1} parent=1 // loop_exit
      _
    %2479 = vsyncpa [#allocation4], 1
    %s2480 = scalar_lea.sflag [#allocation4], 1
    %2481 = vsyncpa %s2480, 1

</llo_original>
